<compile_context>
chip_gen: v7x
topology: tpu7x:2x2x1
jax: 0.10.0
libtpu: 0.0.40
codegen_flags: <defaults>
</compile_context>

<pallas_src>
import math
from functools import partial

import jax
import jax.numpy as jnp
from jax.experimental import pallas as pl
from jax.experimental.pallas import tpu as pltpu

INPUT_DIM = 2
OUTPUT_DIM = 1
HIDDEN_DIMS = [50, 50, 50, 50]


def _default_compute_dtype():
    """bf16 compute on v6e/v7x (bf16-capable VPU/EUP), f32 otherwise (v5e...)."""
    try:
        kind = jax.devices()[0].device_kind.lower()
    except Exception:
        return jnp.float32
    if "v6" in kind or "v7" in kind:
        return jnp.bfloat16
    return jnp.float32


def _mlp_kernel(x_ref,
                w1_ref, b1_ref,
                w2_ref, b2_ref,
                w3_ref, b3_ref,
                w4_ref, b4_ref,
                w5_ref, b5_ref,
                o_ref, *, compute_dtype):
    """Whole MLP forward for one batch tile, feature-major in VMEM.

    x_ref: (INPUT_DIM, T); w_i: (out_i, in_i) (PyTorch layout); b_i: (out_i, 1);
    o_ref: (OUTPUT_DIM, T).  Batch T is on the lane axis.
    """
    h = x_ref[...].astype(compute_dtype)                      # (2, T)
    for w_ref, b_ref in ((w1_ref, b1_ref), (w2_ref, b2_ref),
                         (w3_ref, b3_ref), (w4_ref, b4_ref)):
        z = jnp.dot(w_ref[...].astype(compute_dtype), h,
                    preferred_element_type=jnp.float32) + b_ref[...]   # (50, T) f32
        h = jnp.tanh(z).astype(compute_dtype)
    out = jnp.dot(w5_ref[...].astype(compute_dtype), h,
                  preferred_element_type=jnp.float32) + b5_ref[...]    # (1, T) f32
    o_ref[...] = out.astype(o_ref.dtype)


def adaptive_pinn_forward(x, params, *, batch_tile=1024, compute_dtype=None):
    """Runs the AdaptivePINN forward pass with a Pallas kernel.

    Args:
      x: (N, INPUT_DIM) float32 input (rows = collocation points).
      params: list of (W, b) with W: (out, in) (PyTorch layout), b: (out, 1).
      batch_tile: lane-axis tile (multiple of 128). N is zero-padded up to a
        multiple of it; padding is sliced off before returning.
      compute_dtype: dtype for matmul/tanh inputs (f32 accumulation is kept).
        Defaults to bf16 on v6e/v7x, f32 elsewhere.
    Returns:
      (N, OUTPUT_DIM) float32 output.
    """
    N, D = x.shape
    assert D == INPUT_DIM
    if compute_dtype is None:
        compute_dtype = _default_compute_dtype()

    n_tiles = pl.cdiv(N, batch_tile)
    n_pad = n_tiles * batch_tile

    # feature-major: (D, N_pad), batch along lanes (contiguous DMA, lane-dense out)
    x_t = x.T
    if n_pad != N:
        x_t = jnp.pad(x_t, ((0, 0), (0, n_pad - N)))

    x_spec = pl.BlockSpec((D, batch_tile), lambda i: (0, i))
    out_spec = pl.BlockSpec((OUTPUT_DIM, batch_tile), lambda i: (0, i))

    # Weights/biases are tiny (~10 KiB total): full-array blocks, replicated
    # across the grid (block dims equal the full array dims -> (8,128) rule ok).
    param_specs = []
    flat_params = []
    for (w, b) in params:
        param_specs.append(pl.BlockSpec(w.shape, lambda i: (0, 0)))
        param_specs.append(pl.BlockSpec(b.shape, lambda i: (0, 0)))
        flat_params.append(w)
        flat_params.append(b)

    fn = pl.pallas_call(
        partial(_mlp_kernel, compute_dtype=compute_dtype),
        out_shape=jax.ShapeDtypeStruct((OUTPUT_DIM, n_pad), jnp.float32),
        grid_spec=pltpu.PrefetchScalarGridSpec(
            num_scalar_prefetch=0,
            grid=(n_tiles,),
            in_specs=[x_spec] + param_specs,
            out_specs=out_spec,
        ),
        compiler_params=pltpu.CompilerParams(
            dimension_semantics=("parallel",)),
    )
    out_t = fn(x_t, *flat_params)            # (1, n_pad), lane-dense
    return out_t[:, :N].T                    # (N, 1) — wrapper-side layout plumbing


def init_params(key):
    """Deterministic Xavier-normal weights, zero biases (as in MLP.__init__).

    W stored in PyTorch layout (out, in); b stored as (out, 1) column.
    """
    dims = [INPUT_DIM] + HIDDEN_DIMS + [OUTPUT_DIM]
    params = []
    for fan_in, fan_out in zip(dims[:-1], dims[1:]):
        key, wk = jax.random.split(key)
        std = math.sqrt(2.0 / (fan_in + fan_out))
        w = std * jax.random.normal(wk, (fan_out, fan_in), dtype=jnp.float32)
        b = jnp.zeros((fan_out, 1), dtype=jnp.float32)
        params.append((w, b))
    return params


def reference_forward(x, params):
    """Pure-JAX f32 reference matching PyTorch semantics: tanh(x @ W.T + b)."""
    h = x
    for (w, b) in params[:-1]:
        h = jnp.tanh(h @ w.T + b.T)
    w, b = params[-1]
    return h @ w.T + b.T


if __name__ == "__main__":
    key = jax.random.PRNGKey(0)
    key, xk = jax.random.split(key)

    N = 2048  # batch of collocation points -> 2 grid steps at tile 1024
    x = jax.random.normal(xk, (N, INPUT_DIM), dtype=jnp.float32)

    params = init_params(key)

    compute_dtype = _default_compute_dtype()
    out = adaptive_pinn_forward(x, params, batch_tile=1024,
                                compute_dtype=compute_dtype)
    out = jax.block_until_ready(out)

    ref = reference_forward(x, params)
    assert out.shape == (N, OUTPUT_DIM)

    if jnp.dtype(compute_dtype) == jnp.dtype(jnp.float32):
        atol = rtol = 1e-5
    else:
        # bf16 activation path on v6e/v7x: compare against the f32 reference
        # with a tolerance covering bf16 rounding through 5 layers.
        atol = rtol = 5e-2
    assert jnp.allclose(out, ref, atol=atol, rtol=rtol), (
        float(jnp.max(jnp.abs(out - ref))))

    print("KERNEL_OK")
</pallas_src>

<mosaic_0001>
module attributes {stable_mosaic.version = 11 : i64} {
  func.func @_mlp_kernel(%arg0: i32, %arg1: memref<2x1024xf32, #tpu.memory_space<vmem>>, %arg2: memref<50x2xf32, #tpu.memory_space<vmem>>, %arg3: memref<50x1xf32, #tpu.memory_space<vmem>>, %arg4: memref<50x50xf32, #tpu.memory_space<vmem>>, %arg5: memref<50x1xf32, #tpu.memory_space<vmem>>, %arg6: memref<50x50xf32, #tpu.memory_space<vmem>>, %arg7: memref<50x1xf32, #tpu.memory_space<vmem>>, %arg8: memref<50x50xf32, #tpu.memory_space<vmem>>, %arg9: memref<50x1xf32, #tpu.memory_space<vmem>>, %arg10: memref<1x50xf32, #tpu.memory_space<vmem>>, %arg11: memref<1x1xf32, #tpu.memory_space<vmem>>, %arg12: memref<1x1024xf32, #tpu.memory_space<vmem>>) attributes {dimension_semantics = [#tpu.dimension_semantics<parallel>], iteration_bounds = array<i64: 2>, scalar_prefetch = 0 : i64, scratch_operands = 0 : i64, tpu.core_type = #tpu.core_type<tc>, window_params = [{transform_indices = @transform_0, window_bounds = array<i64: 2, 1024>}, {pipeline_mode = #tpu.pipeline_mode<synchronous>, transform_indices = @transform_1, window_bounds = array<i64: 50, 2>}, {pipeline_mode = #tpu.pipeline_mode<synchronous>, transform_indices = @transform_2, window_bounds = array<i64: 50, 1>}, {pipeline_mode = #tpu.pipeline_mode<synchronous>, transform_indices = @transform_3, window_bounds = array<i64: 50, 50>}, {pipeline_mode = #tpu.pipeline_mode<synchronous>, transform_indices = @transform_4, window_bounds = array<i64: 50, 1>}, {pipeline_mode = #tpu.pipeline_mode<synchronous>, transform_indices = @transform_5, window_bounds = array<i64: 50, 50>}, {pipeline_mode = #tpu.pipeline_mode<synchronous>, transform_indices = @transform_6, window_bounds = array<i64: 50, 1>}, {pipeline_mode = #tpu.pipeline_mode<synchronous>, transform_indices = @transform_7, window_bounds = array<i64: 50, 50>}, {pipeline_mode = #tpu.pipeline_mode<synchronous>, transform_indices = @transform_8, window_bounds = array<i64: 50, 1>}, {pipeline_mode = #tpu.pipeline_mode<synchronous>, transform_indices = @transform_9, window_bounds = array<i64: 1, 50>}, {pipeline_mode = #tpu.pipeline_mode<synchronous>, transform_indices = @transform_10, window_bounds = array<i64: 1, 1>}, {transform_indices = @transform_11, window_bounds = array<i64: 1, 1024>}]} {
    %c0 = arith.constant 0 : index
    %c0_0 = arith.constant 0 : index
    %0 = vector.load %arg1[%c0, %c0_0] : memref<2x1024xf32, #tpu.memory_space<vmem>>, vector<2x1024xf32>
    %c0_1 = arith.constant 0 : index
    %c0_2 = arith.constant 0 : index
    %1 = vector.load %arg2[%c0_1, %c0_2] : memref<50x2xf32, #tpu.memory_space<vmem>>, vector<50x2xf32>
    %cst = arith.constant dense<0.000000e+00> : vector<50x1024xf32>
    %2 = tpu.matmul %1, %0, %cst {dimension_numbers = #tpu.dot_dimension_numbers<[1], [0], [0], [1], [0, 0, 1, 1], [], []>} : vector<50x2xf32>, vector<2x1024xf32>, vector<50x1024xf32> -> vector<50x1024xf32>
    %c0_3 = arith.constant 0 : index
    %c0_4 = arith.constant 0 : index
    %3 = vector.load %arg3[%c0_3, %c0_4] : memref<50x1xf32, #tpu.memory_space<vmem>>, vector<50x1xf32>
    %4 = vector.broadcast %3 : vector<50x1xf32> to vector<50x1024xf32>
    %5 = arith.addf %2, %4 : vector<50x1024xf32>
    %6 = math.tanh %5 : vector<50x1024xf32>
    %c0_5 = arith.constant 0 : index
    %c0_6 = arith.constant 0 : index
    %7 = vector.load %arg4[%c0_5, %c0_6] : memref<50x50xf32, #tpu.memory_space<vmem>>, vector<50x50xf32>
    %cst_7 = arith.constant dense<0.000000e+00> : vector<50x1024xf32>
    %8 = tpu.matmul %7, %6, %cst_7 {dimension_numbers = #tpu.dot_dimension_numbers<[1], [0], [0], [1], [0, 0, 1, 1], [], []>} : vector<50x50xf32>, vector<50x1024xf32>, vector<50x1024xf32> -> vector<50x1024xf32>
    %c0_8 = arith.constant 0 : index
    %c0_9 = arith.constant 0 : index
    %9 = vector.load %arg5[%c0_8, %c0_9] : memref<50x1xf32, #tpu.memory_space<vmem>>, vector<50x1xf32>
    %10 = vector.broadcast %9 : vector<50x1xf32> to vector<50x1024xf32>
    %11 = arith.addf %8, %10 : vector<50x1024xf32>
    %12 = math.tanh %11 : vector<50x1024xf32>
    %c0_10 = arith.constant 0 : index
    %c0_11 = arith.constant 0 : index
    %13 = vector.load %arg6[%c0_10, %c0_11] : memref<50x50xf32, #tpu.memory_space<vmem>>, vector<50x50xf32>
    %cst_12 = arith.constant dense<0.000000e+00> : vector<50x1024xf32>
    %14 = tpu.matmul %13, %12, %cst_12 {dimension_numbers = #tpu.dot_dimension_numbers<[1], [0], [0], [1], [0, 0, 1, 1], [], []>} : vector<50x50xf32>, vector<50x1024xf32>, vector<50x1024xf32> -> vector<50x1024xf32>
    %c0_13 = arith.constant 0 : index
    %c0_14 = arith.constant 0 : index
    %15 = vector.load %arg7[%c0_13, %c0_14] : memref<50x1xf32, #tpu.memory_space<vmem>>, vector<50x1xf32>
    %16 = vector.broadcast %15 : vector<50x1xf32> to vector<50x1024xf32>
    %17 = arith.addf %14, %16 : vector<50x1024xf32>
    %18 = math.tanh %17 : vector<50x1024xf32>
    %c0_15 = arith.constant 0 : index
    %c0_16 = arith.constant 0 : index
    %19 = vector.load %arg8[%c0_15, %c0_16] : memref<50x50xf32, #tpu.memory_space<vmem>>, vector<50x50xf32>
    %cst_17 = arith.constant dense<0.000000e+00> : vector<50x1024xf32>
    %20 = tpu.matmul %19, %18, %cst_17 {dimension_numbers = #tpu.dot_dimension_numbers<[1], [0], [0], [1], [0, 0, 1, 1], [], []>} : vector<50x50xf32>, vector<50x1024xf32>, vector<50x1024xf32> -> vector<50x1024xf32>
    %c0_18 = arith.constant 0 : index
    %c0_19 = arith.constant 0 : index
    %21 = vector.load %arg9[%c0_18, %c0_19] : memref<50x1xf32, #tpu.memory_space<vmem>>, vector<50x1xf32>
    %22 = vector.broadcast %21 : vector<50x1xf32> to vector<50x1024xf32>
    %23 = arith.addf %20, %22 : vector<50x1024xf32>
    %24 = math.tanh %23 : vector<50x1024xf32>
    %c0_20 = arith.constant 0 : index
    %c0_21 = arith.constant 0 : index
    %25 = vector.load %arg10[%c0_20, %c0_21] : memref<1x50xf32, #tpu.memory_space<vmem>>, vector<1x50xf32>
    %cst_22 = arith.constant dense<0.000000e+00> : vector<1x1024xf32>
    %26 = tpu.matmul %25, %24, %cst_22 {dimension_numbers = #tpu.dot_dimension_numbers<[1], [0], [0], [1], [0, 0, 1, 1], [], []>} : vector<1x50xf32>, vector<50x1024xf32>, vector<1x1024xf32> -> vector<1x1024xf32>
    %c0_23 = arith.constant 0 : index
    %c0_24 = arith.constant 0 : index
    %27 = vector.load %arg11[%c0_23, %c0_24] : memref<1x1xf32, #tpu.memory_space<vmem>>, vector<1x1xf32>
    %28 = vector.broadcast %27 : vector<1x1xf32> to vector<1x1024xf32>
    %29 = arith.addf %26, %28 : vector<1x1024xf32>
    %c0_25 = arith.constant 0 : index
    %c0_26 = arith.constant 0 : index
    %30 = vector.load %arg12[%c0_25, %c0_26] : memref<1x1024xf32, #tpu.memory_space<vmem>>, vector<1x1024xf32>
    tpu.vector_store %arg12[%c0_25, %c0_26], %29 {strides = array<i32>} : memref<1x1024xf32, #tpu.memory_space<vmem>>, vector<1x1024xf32>,
    return
  }
  func.func @transform_0(%arg0: i32) -> (i32, i32) {
    %c0_i32 = arith.constant 0 : i32
    %c0_i32_0 = arith.constant 0 : i32
    return %c0_i32, %arg0 : i32, i32
  }
  func.func @transform_1(%arg0: i32) -> (i32, i32) {
    %c0_i32 = arith.constant 0 : i32
    %c0_i32_0 = arith.constant 0 : i32
    %c0_i32_1 = arith.constant 0 : i32
    return %c0_i32, %c0_i32_0 : i32, i32
  }
  func.func @transform_2(%arg0: i32) -> (i32, i32) {
    %c0_i32 = arith.constant 0 : i32
    %c0_i32_0 = arith.constant 0 : i32
    %c0_i32_1 = arith.constant 0 : i32
    return %c0_i32, %c0_i32_0 : i32, i32
  }
  func.func @transform_3(%arg0: i32) -> (i32, i32) {
    %c0_i32 = arith.constant 0 : i32
    %c0_i32_0 = arith.constant 0 : i32
    %c0_i32_1 = arith.constant 0 : i32
    return %c0_i32, %c0_i32_0 : i32, i32
  }
  func.func @transform_4(%arg0: i32) -> (i32, i32) {
    %c0_i32 = arith.constant 0 : i32
    %c0_i32_0 = arith.constant 0 : i32
    %c0_i32_1 = arith.constant 0 : i32
    return %c0_i32, %c0_i32_0 : i32, i32
  }
  func.func @transform_5(%arg0: i32) -> (i32, i32) {
    %c0_i32 = arith.constant 0 : i32
    %c0_i32_0 = arith.constant 0 : i32
    %c0_i32_1 = arith.constant 0 : i32
    return %c0_i32, %c0_i32_0 : i32, i32
  }
  func.func @transform_6(%arg0: i32) -> (i32, i32) {
    %c0_i32 = arith.constant 0 : i32
    %c0_i32_0 = arith.constant 0 : i32
    %c0_i32_1 = arith.constant 0 : i32
    return %c0_i32, %c0_i32_0 : i32, i32
  }
  func.func @transform_7(%arg0: i32) -> (i32, i32) {
    %c0_i32 = arith.constant 0 : i32
    %c0_i32_0 = arith.constant 0 : i32
    %c0_i32_1 = arith.constant 0 : i32
    return %c0_i32, %c0_i32_0 : i32, i32
  }
  func.func @transform_8(%arg0: i32) -> (i32, i32) {
    %c0_i32 = arith.constant 0 : i32
    %c0_i32_0 = arith.constant 0 : i32
    %c0_i32_1 = arith.constant 0 : i32
    return %c0_i32, %c0_i32_0 : i32, i32
  }
  func.func @transform_9(%arg0: i32) -> (i32, i32) {
    %c0_i32 = arith.constant 0 : i32
    %c0_i32_0 = arith.constant 0 : i32
    %c0_i32_1 = arith.constant 0 : i32
    return %c0_i32, %c0_i32_0 : i32, i32
  }
  func.func @transform_10(%arg0: i32) -> (i32, i32) {
    %c0_i32 = arith.constant 0 : i32
    %c0_i32_0 = arith.constant 0 : i32
    %c0_i32_1 = arith.constant 0 : i32
    return %c0_i32, %c0_i32_0 : i32, i32
  }
  func.func @transform_11(%arg0: i32) -> (i32, i32) {
    %c0_i32 = arith.constant 0 : i32
    %c0_i32_0 = arith.constant 0 : i32
    return %c0_i32, %arg0 : i32, i32
  }
}

</mosaic_0001>

<llo_original>
// kernel: tpu_custom_call.1
$region0: #{tpu_custom_call.1}
  #allocation0 [shape = 'u32[]', space=smem, size = 0x4, offset = 0x4, fixed_abs, tag = 'smem constant byte address 0x4 - core index']
  #allocation1 [shape = 'u32[144,128]{1,0:T(1,128)}', space=vmem, size = 0x12000, scoped, tag = 'internal scratch']
  #allocation2 [shape = 'f32[1,1]{1,0:T(1,128)S(1)}', space=vmem, size = 0x200, scoped, tag = 'scoped memory for tpu_custom_call.1']
  %s0 = inlined_call_operand.vmem [shape: f32[2,2048], index: 0, kind: input, shape index: {}]
  %s1 = inlined_call_operand.vmem [shape: f32[50,2], index: 1, kind: input, shape index: {}]
  %s2 = inlined_call_operand.vmem [shape: f32[50,1], index: 2, kind: input, shape index: {}]
  %s3 = inlined_call_operand.vmem [shape: f32[50,50], index: 3, kind: input, shape index: {}]
  %s4 = inlined_call_operand.vmem [shape: f32[50,1], index: 4, kind: input, shape index: {}]
  %s5 = inlined_call_operand.vmem [shape: f32[50,50], index: 5, kind: input, shape index: {}]
  %s6 = inlined_call_operand.vmem [shape: f32[50,1], index: 6, kind: input, shape index: {}]
  %s7 = inlined_call_operand.vmem [shape: f32[50,50], index: 7, kind: input, shape index: {}]
  %s8 = inlined_call_operand.vmem [shape: f32[50,1], index: 8, kind: input, shape index: {}]
  %s9 = inlined_call_operand.vmem [shape: f32[1,50], index: 9, kind: input, shape index: {}]
  %s10 = inlined_call_operand.<no memory space> [shape: f32[1,1], index: 10, kind: input, shape index: {}]
  %s11 = inlined_call_operand.hbm [shape: f32[1,2048], index: 11, kind: output, shape index: {}]
  %s12 = sld [smem:[#allocation0]]
  $region77: #{tpu_custom_call.1} parent=0
    _
  %s14 = ssub.s32 1, %s12
  %s15 = scalar_select 0, %s14, %s12
  %v16 = vstv %s10
  %17 = vst [vmem:[#allocation2] sm:$0x1] %v16
  $region1: #{tpu_custom_call.1} parent=0
    #allocation3 [shape = 'u8[8192]{0}', space=vmem, size = 0x2000, scoped, tag = 'output window, operand 0']
    #allocation4 [shape = 's32[2]{0}', space=sflag, size = 0x8, scoped, tag = 'scoped memory for tpu_custom_call.1']
    %18 = vsyncpa [#allocation4], 0
    %s19 = scalar_lea.sflag [#allocation4], 1
    %20 = vsyncpa %s19, 0
    loop: start=0, step=1, limit=4
    $region2: #{tpu_custom_call.1} parent=1 // loop_pre_header
      _
    $region3: #{tpu_custom_call.1} parent=1 // loop_header
      %s22 = sphi 0, %s26
      %p23 = scmp.ge.s32.totalorder %s22, 4
      %s32 = sphi 0, %s34
      %s35 = sphi 0, %s32
      %s36 = sphi 0, %s35
      %s52 = sphi 0, %s36
      %s56 = sphi 0, %s56
      %s58 = sphi 0, %s56
      %s59 = sphi 0, %s58
      %s73 = sphi 0, %s59
      %s77 = sphi 0, %s77
      %s79 = sphi 0, %s77
      %s80 = sphi 0, %s79
      %s94 = sphi 0, %s80
      %s98 = sphi 0, %s98
      %s100 = sphi 0, %s98
      %s101 = sphi 0, %s100
      %s115 = sphi 0, %s101
      %s119 = sphi 0, %s119
      %s121 = sphi 0, %s119
      %s122 = sphi 0, %s121
      %s136 = sphi 0, %s122
      %s140 = sphi 0, %s140
      %s142 = sphi 0, %s140
      %s143 = sphi 0, %s142
      %s157 = sphi 0, %s143
      %s161 = sphi 0, %s161
      %s163 = sphi 0, %s161
      %s164 = sphi 0, %s163
      %s178 = sphi 0, %s164
      %s182 = sphi 0, %s182
      %s184 = sphi 0, %s182
      %s185 = sphi 0, %s184
      %s199 = sphi 0, %s185
      %s203 = sphi 0, %s203
      %s205 = sphi 0, %s203
      %s206 = sphi 0, %s205
      %s220 = sphi 0, %s206
      %s224 = sphi 0, %s224
      %s226 = sphi 0, %s224
      %s227 = sphi 0, %s226
      %s241 = sphi 0, %s227
      %s245 = sphi 0, %s245
      %s247 = sphi 0, %s245
      %s248 = sphi 0, %s247
      %s262 = sphi 0, %s248
      %s268 = sphi 0, %s270
      %s271 = sphi 0, %s268
      %s272 = sphi 0, %s271
      %s288 = sphi 0, %s272
    $region4: #{tpu_custom_call.1} parent=1 // loop_header_branch
      %25 = sbr.rel (%p23) target = $region8
    $region5: #{tpu_custom_call.1} parent=1 // loop_body
      %s27 = ssub.s32 %s22, 1
      %s28 = ssub.s32 %s22, 2
      %s29 = sadd.s32 %s22, 1
      %s30 = ssub.s32 %s22, %s29
      %p31 = scmp.eq.s32.totalorder %s30, 0
      %s33 = sadd.s32 %s32, 1
      %s34 = scalar_select %p31, %s32, %s33
      %p37 = pneg %p31
      %p38 = scmp.eq.s32.totalorder %s22, 1
      %p39 = por %p37, %p38
      %p40 = scmp.ne.s32.totalorder %s32, %s35
      %p41 = scmp.eq.s32.totalorder %s22, 0
      %p42 = por %p40, %p41
      %p43 = scmp.ne.s32.totalorder %s32, %s35
      %p44 = scmp.eq.s32.totalorder %s27, 1
      %p45 = por %p43, %p44
      %p46 = scmp.ne.s32.totalorder %s35, %s36
      %p47 = scmp.eq.s32.totalorder %s27, 0
      %p48 = por %p46, %p47
      %p49 = scmp.ne.s32.totalorder %s35, %s36
      %p50 = scmp.eq.s32.totalorder %s28, 1
      %p51 = por %p49, %p50
      %p53 = scmp.ne.s32.totalorder %s36, %s52
      %p54 = scmp.eq.s32.totalorder %s28, 0
      %p55 = por %p53, %p54
      %s57 = sadd.s32 %s56, 1
      %p60 = scmp.eq.s32.totalorder %s22, 1
      %p61 = scmp.ne.s32.totalorder %s56, %s58
      %p62 = scmp.eq.s32.totalorder %s22, 0
      %p63 = por %p61, %p62
      %p64 = scmp.ne.s32.totalorder %s56, %s58
      %p65 = scmp.eq.s32.totalorder %s27, 1
      %p66 = por %p64, %p65
      %p67 = scmp.ne.s32.totalorder %s58, %s59
      %p68 = scmp.eq.s32.totalorder %s27, 0
      %p69 = por %p67, %p68
      %p70 = scmp.ne.s32.totalorder %s58, %s59
      %p71 = scmp.eq.s32.totalorder %s28, 1
      %p72 = por %p70, %p71
      %p74 = scmp.ne.s32.totalorder %s59, %s73
      %p75 = scmp.eq.s32.totalorder %s28, 0
      %p76 = por %p74, %p75
      %s78 = sadd.s32 %s77, 1
      %p81 = scmp.eq.s32.totalorder %s22, 1
      %p82 = scmp.ne.s32.totalorder %s77, %s79
      %p83 = scmp.eq.s32.totalorder %s22, 0
      %p84 = por %p82, %p83
      %p85 = scmp.ne.s32.totalorder %s77, %s79
      %p86 = scmp.eq.s32.totalorder %s27, 1
      %p87 = por %p85, %p86
      %p88 = scmp.ne.s32.totalorder %s79, %s80
      %p89 = scmp.eq.s32.totalorder %s27, 0
      %p90 = por %p88, %p89
      %p91 = scmp.ne.s32.totalorder %s79, %s80
      %p92 = scmp.eq.s32.totalorder %s28, 1
      %p93 = por %p91, %p92
      %p95 = scmp.ne.s32.totalorder %s80, %s94
      %p96 = scmp.eq.s32.totalorder %s28, 0
      %p97 = por %p95, %p96
      %s99 = sadd.s32 %s98, 1
      %p102 = scmp.eq.s32.totalorder %s22, 1
      %p103 = scmp.ne.s32.totalorder %s98, %s100
      %p104 = scmp.eq.s32.totalorder %s22, 0
      %p105 = por %p103, %p104
      %p106 = scmp.ne.s32.totalorder %s98, %s100
      %p107 = scmp.eq.s32.totalorder %s27, 1
      %p108 = por %p106, %p107
      %p109 = scmp.ne.s32.totalorder %s100, %s101
      %p110 = scmp.eq.s32.totalorder %s27, 0
      %p111 = por %p109, %p110
      %p112 = scmp.ne.s32.totalorder %s100, %s101
      %p113 = scmp.eq.s32.totalorder %s28, 1
      %p114 = por %p112, %p113
      %p116 = scmp.ne.s32.totalorder %s101, %s115
      %p117 = scmp.eq.s32.totalorder %s28, 0
      %p118 = por %p116, %p117
      %s120 = sadd.s32 %s119, 1
      %p123 = scmp.eq.s32.totalorder %s22, 1
      %p124 = scmp.ne.s32.totalorder %s119, %s121
      %p125 = scmp.eq.s32.totalorder %s22, 0
      %p126 = por %p124, %p125
      %p127 = scmp.ne.s32.totalorder %s119, %s121
      %p128 = scmp.eq.s32.totalorder %s27, 1
      %p129 = por %p127, %p128
      %p130 = scmp.ne.s32.totalorder %s121, %s122
      %p131 = scmp.eq.s32.totalorder %s27, 0
      %p132 = por %p130, %p131
      %p133 = scmp.ne.s32.totalorder %s121, %s122
      %p134 = scmp.eq.s32.totalorder %s28, 1
      %p135 = por %p133, %p134
      %p137 = scmp.ne.s32.totalorder %s122, %s136
      %p138 = scmp.eq.s32.totalorder %s28, 0
      %p139 = por %p137, %p138
      %s141 = sadd.s32 %s140, 1
      %p144 = scmp.eq.s32.totalorder %s22, 1
      %p145 = scmp.ne.s32.totalorder %s140, %s142
      %p146 = scmp.eq.s32.totalorder %s22, 0
      %p147 = por %p145, %p146
      %p148 = scmp.ne.s32.totalorder %s140, %s142
      %p149 = scmp.eq.s32.totalorder %s27, 1
      %p150 = por %p148, %p149
      %p151 = scmp.ne.s32.totalorder %s142, %s143
      %p152 = scmp.eq.s32.totalorder %s27, 0
      %p153 = por %p151, %p152
      %p154 = scmp.ne.s32.totalorder %s142, %s143
      %p155 = scmp.eq.s32.totalorder %s28, 1
      %p156 = por %p154, %p155
      %p158 = scmp.ne.s32.totalorder %s143, %s157
      %p159 = scmp.eq.s32.totalorder %s28, 0
      %p160 = por %p158, %p159
      %s162 = sadd.s32 %s161, 1
      %p165 = scmp.eq.s32.totalorder %s22, 1
      %p166 = scmp.ne.s32.totalorder %s161, %s163
      %p167 = scmp.eq.s32.totalorder %s22, 0
      %p168 = por %p166, %p167
      %p169 = scmp.ne.s32.totalorder %s161, %s163
      %p170 = scmp.eq.s32.totalorder %s27, 1
      %p171 = por %p169, %p170
      %p172 = scmp.ne.s32.totalorder %s163, %s164
      %p173 = scmp.eq.s32.totalorder %s27, 0
      %p174 = por %p172, %p173
      %p175 = scmp.ne.s32.totalorder %s163, %s164
      %p176 = scmp.eq.s32.totalorder %s28, 1
      %p177 = por %p175, %p176
      %p179 = scmp.ne.s32.totalorder %s164, %s178
      %p180 = scmp.eq.s32.totalorder %s28, 0
      %p181 = por %p179, %p180
      %s183 = sadd.s32 %s182, 1
      %p186 = scmp.eq.s32.totalorder %s22, 1
      %p187 = scmp.ne.s32.totalorder %s182, %s184
      %p188 = scmp.eq.s32.totalorder %s22, 0
      %p189 = por %p187, %p188
      %p190 = scmp.ne.s32.totalorder %s182, %s184
      %p191 = scmp.eq.s32.totalorder %s27, 1
      %p192 = por %p190, %p191
      %p193 = scmp.ne.s32.totalorder %s184, %s185
      %p194 = scmp.eq.s32.totalorder %s27, 0
      %p195 = por %p193, %p194
      %p196 = scmp.ne.s32.totalorder %s184, %s185
      %p197 = scmp.eq.s32.totalorder %s28, 1
      %p198 = por %p196, %p197
      %p200 = scmp.ne.s32.totalorder %s185, %s199
      %p201 = scmp.eq.s32.totalorder %s28, 0
      %p202 = por %p200, %p201
      %s204 = sadd.s32 %s203, 1
      %p207 = scmp.eq.s32.totalorder %s22, 1
      %p208 = scmp.ne.s32.totalorder %s203, %s205
      %p209 = scmp.eq.s32.totalorder %s22, 0
      %p210 = por %p208, %p209
      %p211 = scmp.ne.s32.totalorder %s203, %s205
      %p212 = scmp.eq.s32.totalorder %s27, 1
      %p213 = por %p211, %p212
      %p214 = scmp.ne.s32.totalorder %s205, %s206
      %p215 = scmp.eq.s32.totalorder %s27, 0
      %p216 = por %p214, %p215
      %p217 = scmp.ne.s32.totalorder %s205, %s206
      %p218 = scmp.eq.s32.totalorder %s28, 1
      %p219 = por %p217, %p218
      %p221 = scmp.ne.s32.totalorder %s206, %s220
      %p222 = scmp.eq.s32.totalorder %s28, 0
      %p223 = por %p221, %p222
      %s225 = sadd.s32 %s224, 1
      %p228 = scmp.eq.s32.totalorder %s22, 1
      %p229 = scmp.ne.s32.totalorder %s224, %s226
      %p230 = scmp.eq.s32.totalorder %s22, 0
      %p231 = por %p229, %p230
      %p232 = scmp.ne.s32.totalorder %s224, %s226
      %p233 = scmp.eq.s32.totalorder %s27, 1
      %p234 = por %p232, %p233
      %p235 = scmp.ne.s32.totalorder %s226, %s227
      %p236 = scmp.eq.s32.totalorder %s27, 0
      %p237 = por %p235, %p236
      %p238 = scmp.ne.s32.totalorder %s226, %s227
      %p239 = scmp.eq.s32.totalorder %s28, 1
      %p240 = por %p238, %p239
      %p242 = scmp.ne.s32.totalorder %s227, %s241
      %p243 = scmp.eq.s32.totalorder %s28, 0
      %p244 = por %p242, %p243
      %s246 = sadd.s32 %s245, 1
      %p249 = scmp.eq.s32.totalorder %s22, 1
      %p250 = scmp.ne.s32.totalorder %s245, %s247
      %p251 = scmp.eq.s32.totalorder %s22, 0
      %p252 = por %p250, %p251
      %p253 = scmp.ne.s32.totalorder %s245, %s247
      %p254 = scmp.eq.s32.totalorder %s27, 1
      %p255 = por %p253, %p254
      %p256 = scmp.ne.s32.totalorder %s247, %s248
      %p257 = scmp.eq.s32.totalorder %s27, 0
      %p258 = por %p256, %p257
      %p259 = scmp.ne.s32.totalorder %s247, %s248
      %p260 = scmp.eq.s32.totalorder %s28, 1
      %p261 = por %p259, %p260
      %p263 = scmp.ne.s32.totalorder %s248, %s262
      %p264 = scmp.eq.s32.totalorder %s28, 0
      %p265 = por %p263, %p264
      %s266 = ssub.s32 %s22, %s29
      %p267 = scmp.eq.s32.totalorder %s266, 0
      %s269 = sadd.s32 %s268, 1
      %s270 = scalar_select %p267, %s268, %s269
      %p273 = pneg %p267
      %p274 = scmp.eq.s32.totalorder %s22, 1
      %p275 = por %p273, %p274
      %p276 = scmp.ne.s32.totalorder %s268, %s271
      %p277 = scmp.eq.s32.totalorder %s22, 0
      %p278 = por %p276, %p277
      %p279 = scmp.ne.s32.totalorder %s268, %s271
      %p280 = scmp.eq.s32.totalorder %s27, 1
      %p281 = por %p279, %p280
      %p282 = scmp.ne.s32.totalorder %s271, %s272
      %p283 = scmp.eq.s32.totalorder %s27, 0
      %p284 = por %p282, %p283
      %p285 = scmp.ne.s32.totalorder %s271, %s272
      %p286 = scmp.eq.s32.totalorder %s28, 1
      %p287 = por %p285, %p286
      %p289 = scmp.ne.s32.totalorder %s272, %s288
      %p290 = scmp.eq.s32.totalorder %s28, 0
      %p291 = por %p289, %p290
      %p292 = scmp.le.s32.totalorder 1, %s22
      %p293 = scmp.lt.s32.totalorder %s22, 3
      %p294 = pnand %p292, %p293
      %p295 = pneg %p294
      // Predicated region
      $region9: #{tpu_custom_call.1} parent=5 // pred_check
        _
      $region10: #{tpu_custom_call.1} parent=5 // pred_check_branch
        %297 = sbr.rel (%p294) target = $region12
      $region11: #{tpu_custom_call.1} parent=5 // pred_region
        %s298 = ssub.s32 %s22, 1
        // Predicated region
        $region13: #{tpu_custom_call.1} parent=11 // pred_check
          %p299 = pneg %p69
        $region14: #{tpu_custom_call.1} parent=11 // pred_check_branch
          %301 = sbr.rel (%p299) target = $region16
        $region15: #{tpu_custom_call.1} parent=11 // pred_region
          _
        $region16: #{tpu_custom_call.1} parent=11 // pred_fallthru
          _
        // Predicated region
        $region17: #{tpu_custom_call.1} parent=11 // pred_check
          %p302 = pneg %p90
        $region18: #{tpu_custom_call.1} parent=11 // pred_check_branch
          %304 = sbr.rel (%p302) target = $region20
        $region19: #{tpu_custom_call.1} parent=11 // pred_region
          _
        $region20: #{tpu_custom_call.1} parent=11 // pred_fallthru
          _
        // Predicated region
        $region21: #{tpu_custom_call.1} parent=11 // pred_check
          %p305 = pneg %p111
        $region22: #{tpu_custom_call.1} parent=11 // pred_check_branch
          %307 = sbr.rel (%p305) target = $region24
        $region23: #{tpu_custom_call.1} parent=11 // pred_region
          _
        $region24: #{tpu_custom_call.1} parent=11 // pred_fallthru
          _
        // Predicated region
        $region25: #{tpu_custom_call.1} parent=11 // pred_check
          %p308 = pneg %p132
        $region26: #{tpu_custom_call.1} parent=11 // pred_check_branch
          %310 = sbr.rel (%p308) target = $region28
        $region27: #{tpu_custom_call.1} parent=11 // pred_region
          _
        $region28: #{tpu_custom_call.1} parent=11 // pred_fallthru
          _
        // Predicated region
        $region29: #{tpu_custom_call.1} parent=11 // pred_check
          %p311 = pneg %p153
        $region30: #{tpu_custom_call.1} parent=11 // pred_check_branch
          %313 = sbr.rel (%p311) target = $region32
        $region31: #{tpu_custom_call.1} parent=11 // pred_region
          _
        $region32: #{tpu_custom_call.1} parent=11 // pred_fallthru
          _
        // Predicated region
        $region33: #{tpu_custom_call.1} parent=11 // pred_check
          %p314 = pneg %p174
        $region34: #{tpu_custom_call.1} parent=11 // pred_check_branch
          %316 = sbr.rel (%p314) target = $region36
        $region35: #{tpu_custom_call.1} parent=11 // pred_region
          _
        $region36: #{tpu_custom_call.1} parent=11 // pred_fallthru
          _
        // Predicated region
        $region37: #{tpu_custom_call.1} parent=11 // pred_check
          %p317 = pneg %p195
        $region38: #{tpu_custom_call.1} parent=11 // pred_check_branch
          %319 = sbr.rel (%p317) target = $region40
        $region39: #{tpu_custom_call.1} parent=11 // pred_region
          _
        $region40: #{tpu_custom_call.1} parent=11 // pred_fallthru
          _
        // Predicated region
        $region41: #{tpu_custom_call.1} parent=11 // pred_check
          %p320 = pneg %p216
        $region42: #{tpu_custom_call.1} parent=11 // pred_check_branch
          %322 = sbr.rel (%p320) target = $region44
        $region43: #{tpu_custom_call.1} parent=11 // pred_region
          _
        $region44: #{tpu_custom_call.1} parent=11 // pred_fallthru
          _
        // Predicated region
        $region45: #{tpu_custom_call.1} parent=11 // pred_check
          %p323 = pneg %p237
        $region46: #{tpu_custom_call.1} parent=11 // pred_check_branch
          %325 = sbr.rel (%p323) target = $region48
        $region47: #{tpu_custom_call.1} parent=11 // pred_region
          _
        $region48: #{tpu_custom_call.1} parent=11 // pred_fallthru
          _
        // Predicated region
        $region49: #{tpu_custom_call.1} parent=11 // pred_check
          %p326 = pneg %p258
        $region50: #{tpu_custom_call.1} parent=11 // pred_check_branch
          %328 = sbr.rel (%p326) target = $region52
        $region51: #{tpu_custom_call.1} parent=11 // pred_region
          _
        $region52: #{tpu_custom_call.1} parent=11 // pred_fallthru
          _
      $region12: #{tpu_custom_call.1} parent=5 // pred_fallthru
        _
      %p329 = scmp.lt.s32.totalorder %s22, 2
      // Predicated region
      $region53: #{tpu_custom_call.1} parent=5 // pred_check
        %p330 = pneg %p329
      $region54: #{tpu_custom_call.1} parent=5 // pred_check_branch
        %332 = sbr.rel (%p330) target = $region56
      $region55: #{tpu_custom_call.1} parent=5 // pred_region
        // Predicated region
        $region57: #{tpu_custom_call.1} parent=55 // pred_check
          %p333 = pneg %p42
        $region58: #{tpu_custom_call.1} parent=55 // pred_check_branch
          %335 = sbr.rel (%p333) target = $region60
        $region59: #{tpu_custom_call.1} parent=55 // pred_region
          %s336 = smul.u32 8, %s22
          %p337 = scmp.lt.s32.totalorder %s336, 15
          %s338 = scalar_select %p337, %s336, 15
          %s339 = smul.addr %s338, 2
          %s340 = scalar_lea.vmem %s0, %s339
          %s341 = smul.u32 8, %s22
        $region60: #{tpu_custom_call.1} parent=55 // pred_fallthru
          _
      $region56: #{tpu_custom_call.1} parent=5 // pred_fallthru
        _
      %p342 = scmp.le.s32.totalorder 1, %s22
      %p343 = scmp.lt.s32.totalorder %s22, 3
      %p344 = pnand %p342, %p343
      %p345 = pneg %p344
      // Predicated region
      $region61: #{tpu_custom_call.1} parent=5 // pred_check
        _
      $region62: #{tpu_custom_call.1} parent=5 // pred_check_branch
        %347 = sbr.rel (%p344) target = $region64
      $region63: #{tpu_custom_call.1} parent=5 // pred_region
        %s348 = ssub.s32 %s22, 1
        %s349 = smul.u32 8, %s27
        %p350 = scmp.lt.s32.totalorder %s349, 15
        %s351 = scalar_select %p350, %s349, 15
        %s352 = smul.addr %s351, 2
        %s353 = scalar_lea.vmem %s0, %s352
        %p354 = pneg %p48
        %p355 = pneg %p45
        %p356 = pneg %p69
        %p357 = pneg %p66
        %p358 = pneg %p90
        %p359 = pneg %p87
        %p360 = pneg %p111
        %p361 = pneg %p108
        %p362 = pneg %p132
        %p363 = pneg %p129
        %p364 = pneg %p153
        %p365 = pneg %p150
        %p366 = pneg %p174
        %p367 = pneg %p171
        %p368 = pneg %p195
        %p369 = pneg %p192
        %p370 = pneg %p216
        %p371 = pneg %p213
        %p372 = pneg %p237
        %p373 = pneg %p234
        %p374 = pneg %p258
        %p375 = pneg %p255
        %p376 = pneg %p284
        %p377 = pneg %p281
        %s378 = sand.u32 %s271, 1
        %s379 = scalar_lea.sflag [#allocation4], %s378
        %s380 = sand.u32 %s271, 1
        %s381 = smul.addr %s380, 8
        %s382 = scalar_lea.vmem [#allocation3], %s381
        %s383 = smul.u32 8, %s27
        %p384 = scmp.lt.s32.totalorder %s383, 15
        %s385 = scalar_select %p384, %s383, 15
        %s386 = smul.addr %s385, 2
        %s387 = scalar_lea.vmem %s0, %s386
        %s388 = smul.u32 8, %s27
        %s389 = smul.u32 8, %s27
        %v390 = vld [vmem:[%s387] sm:$0xff]
        %v391 = vld [vmem:[%s387 + $0x8] sm:$0xff]
        %v392 = vld [vmem:[%s1] sm:$0xff]
        %v393 = vld [vmem:[%s1 + $0x8] sm:$0xff]
        %v394 = vld [vmem:[%s1 + $0x10] sm:$0xff]
        %v395 = vld [vmem:[%s1 + $0x18] sm:$0xff]
        %v396 = vld [vmem:[%s1 + $0x20] sm:$0xff]
        %v397 = vld [vmem:[%s1 + $0x28] sm:$0xff]
        %v398 = vld [vmem:[%s1 + $0x30] sm:$0x3]
        %v399 = vld [vmem:[%s2] sm:$0xff]
        %v400 = vld [vmem:[%s2 + $0x8] sm:$0xff]
        %v401 = vld [vmem:[%s2 + $0x10] sm:$0xff]
        %v402 = vld [vmem:[%s2 + $0x18] sm:$0xff]
        %v403 = vld [vmem:[%s2 + $0x20] sm:$0xff]
        %v404 = vld [vmem:[%s2 + $0x28] sm:$0xff]
        %v405 = vld [vmem:[%s2 + $0x30] sm:$0x3]
        %407 = vset.pattern.permute.xlu0 0
        %408 = vperm.xlu0 %407, %v399
        %v409 = vpop.permute.xlu0 %408
        %412 = vset.pattern.permute.xlu0 0
        %413 = vperm.xlu0 %412, %v400
        %v414 = vpop.permute.xlu0 %413
        %417 = vset.pattern.permute.xlu0 0
        %418 = vperm.xlu0 %417, %v401
        %v419 = vpop.permute.xlu0 %418
        %422 = vset.pattern.permute.xlu0 0
        %423 = vperm.xlu0 %422, %v402
        %v424 = vpop.permute.xlu0 %423
        %427 = vset.pattern.permute.xlu0 0
        %428 = vperm.xlu0 %427, %v403
        %v429 = vpop.permute.xlu0 %428
        %432 = vset.pattern.permute.xlu0 0
        %433 = vperm.xlu0 %432, %v404
        %v434 = vpop.permute.xlu0 %433
        %437 = vset.pattern.permute.xlu0 0
        %438 = vperm.xlu0 %437, %v405
        %v439 = vpop.permute.xlu0 %438
        %v443 = vcombine.high %v390, %v390
        %v445 = vunpack.c.l.s4 1983009808
        %v446 = vunpack.c.0.s8 %v445
        %v447 = vlaneseq
        %v448 = vshrl.u32 %v447, 7
        %v449 = vsub.s32 %v446, %v448
        %v450 = vrot.slane %v390, %v449
        %v452 = vunpack.c.l.s4 1983009808
        %v453 = vunpack.c.0.s8 %v452
        %v454 = vlaneseq
        %v455 = vshrl.u32 %v454, 7
        %v456 = vsub.s32 %v453, %v455
        %v457 = vrot.slane %v443, %v456
        %v458 = vcombine.high %v450, %v450
        %v459 = vcombine.high %v457, %v457
        %v460 = vcombine.high %v391, %v391
        %v462 = vunpack.c.l.s4 1983009808
        %v463 = vunpack.c.0.s8 %v462
        %v464 = vlaneseq
        %v465 = vshrl.u32 %v464, 7
        %v466 = vsub.s32 %v463, %v465
        %v467 = vrot.slane %v391, %v466
        %v469 = vunpack.c.l.s4 1983009808
        %v470 = vunpack.c.0.s8 %v469
        %v471 = vlaneseq
        %v472 = vshrl.u32 %v471, 7
        %v473 = vsub.s32 %v470, %v472
        %v474 = vrot.slane %v460, %v473
        %v475 = vcombine.high %v467, %v467
        %v476 = vcombine.high %v474, %v474
        %vm477 = vcmask 15360
        %v479 = vsel %vm477, %v392, 0
        %v482 = vsel %vm477, %v393, 0
        %v485 = vsel %vm477, %v394, 0
        %v488 = vsel %vm477, %v395, 0
        %v491 = vsel %vm477, %v396, 0
        %v494 = vsel %vm477, %v397, 0
        %v497 = vsel %vm477, %v398, 0
        %vm499 = vcmask 1041408
        %v500 = vsel %vm499, %v450, 0
        %v502 = vsel %vm499, %v458, 0
        %v504 = vsel %vm499, %v457, 0
        %v506 = vsel %vm499, %v459, 0
        %v508 = vsel %vm499, %v467, 0
        %v510 = vsel %vm499, %v475, 0
        %v512 = vsel %vm499, %v474, 0
        %v514 = vsel %vm499, %v476, 0
        %516 = vmatprep.subr.mxu0 %v502
        %517 = vmatpush1.msra.mxu0 %v500
        %518 = vmatprep.subr.mxu0 0.0
        %519 = vmatpush1.msra.mxu0 0.0
        %520 = vmatprep.subr.mxu0 0.0
        %521 = vmatpush1.msra.mxu0 0.0
        %522 = vmatprep.subr.mxu0 0.0
        %523 = vmatpush1.msra.mxu0 0.0
        %524 = vmatprep.subr.mxu0 0.0
        %525 = vmatpush1.msra.mxu0 0.0
        %526 = vmatprep.subr.mxu0 0.0
        %527 = vmatpush1.msra.mxu0 0.0
        %528 = vmatprep.subr.mxu0 0.0
        %529 = vmatpush1.msra.mxu0 0.0
        %530 = vmatprep.subr.mxu0 0.0
        %531 = vmatpush1.msra.mxu0 0.0
        %532 = vmatprep.subr.mxu0 0.0
        %533 = vmatpush1.msra.mxu0 0.0
        %534 = vmatprep.subr.mxu0 0.0
        %535 = vmatpush1.msra.mxu0 0.0
        %536 = vmatprep.subr.mxu0 0.0
        %537 = vmatpush1.msra.mxu0 0.0
        %538 = vmatprep.subr.mxu0 0.0
        %539 = vmatpush1.msra.mxu0 0.0
        %540 = vmatprep.subr.mxu0 0.0
        %541 = vmatpush1.msra.mxu0 0.0
        %542 = vmatprep.subr.mxu0 0.0
        %543 = vmatpush1.msra.mxu0 0.0
        %544 = vmatprep.subr.mxu0 0.0
        %545 = vmatpush1.msra.mxu0 0.0
        %546 = vmatprep.subr.mxu0 0.0
        %547 = vmatpush1.msra.mxu0 0.0
        %548 = vmatprep.subr.mxu0 0.0
        %549 = vmatpush1.msra.mxu0 0.0
        %550 = vmatprep.subr.mxu0 0.0
        %551 = vmatpush1.msra.mxu0 0.0
        %552 = vmatprep.subr.mxu0 0.0
        %553 = vmatpush1.msra.mxu0 0.0
        %554 = vmatprep.subr.mxu0 0.0
        %555 = vmatpush1.msra.mxu0 0.0
        %556 = vmatprep.subr.mxu0 0.0
        %557 = vmatpush1.msra.mxu0 0.0
        %558 = vmatprep.subr.mxu0 0.0
        %559 = vmatpush1.msra.mxu0 0.0
        %560 = vmatprep.subr.mxu0 0.0
        %561 = vmatpush1.msra.mxu0 0.0
        %562 = vmatprep.subr.mxu0 0.0
        %563 = vmatpush1.msra.mxu0 0.0
        %564 = vmatprep.subr.mxu0 0.0
        %565 = vmatpush1.msra.mxu0 0.0
        %566 = vmatprep.subr.mxu0 0.0
        %567 = vmatpush1.msra.mxu0 0.0
        %568 = vmatprep.subr.mxu0 0.0
        %569 = vmatpush1.msra.mxu0 0.0
        %570 = vmatprep.subr.mxu0 0.0
        %571 = vmatpush1.msra.mxu0 0.0
        %572 = vmatprep.subr.mxu0 0.0
        %573 = vmatpush1.msra.mxu0 0.0
        %574 = vmatprep.subr.mxu0 0.0
        %575 = vmatpush1.msra.mxu0 0.0
        %576 = vmatprep.subr.mxu0 0.0
        %577 = vmatpush1.msra.mxu0 0.0
        %578 = vmatprep.subr.mxu0 0.0
        %579 = vmatpush1.msra.mxu0 0.0
        %580 = vmatprep.mubr.f32.mxu0 0.0
        %581 = vmatmul.mubr.f32.gmra.mrb[0].mxu0 %v479
        %v582 = vpop.f32.mrb[0].mxu0
        %v583 = vadd.f32 %v409, %v582
        %v584 = vpop.f32.mrb[0].mxu0
        %v585 = vadd.f32 %v409, %v584
        %586 = vmatprep.mubr.f32.mxu0 0.0
        %587 = vmatmul.mubr.f32.gmra.mrb[0].mxu0 %v482
        %v588 = vpop.f32.mrb[0].mxu0
        %v589 = vadd.f32 %v414, %v588
        %v590 = vpop.f32.mrb[0].mxu0
        %v591 = vadd.f32 %v414, %v590
        %592 = vmatprep.mubr.f32.mxu0 0.0
        %593 = vmatmul.mubr.f32.gmra.mrb[0].mxu0 %v485
        %v594 = vpop.f32.mrb[0].mxu0
        %v595 = vadd.f32 %v419, %v594
        %v596 = vpop.f32.mrb[0].mxu0
        %v597 = vadd.f32 %v419, %v596
        %598 = vmatprep.mubr.f32.mxu0 0.0
        %599 = vmatmul.mubr.f32.gmra.mrb[0].mxu0 %v488
        %v600 = vpop.f32.mrb[0].mxu0
        %v601 = vadd.f32 %v424, %v600
        %v602 = vpop.f32.mrb[0].mxu0
        %v603 = vadd.f32 %v424, %v602
        %604 = vmatprep.mubr.f32.mxu0 0.0
        %605 = vmatmul.mubr.f32.gmra.mrb[0].mxu0 %v491
        %v606 = vpop.f32.mrb[0].mxu0
        %v607 = vadd.f32 %v429, %v606
        %v608 = vpop.f32.mrb[0].mxu0
        %v609 = vadd.f32 %v429, %v608
        %610 = vmatprep.mubr.f32.mxu0 0.0
        %611 = vmatmul.mubr.f32.gmra.mrb[0].mxu0 %v494
        %v612 = vpop.f32.mrb[0].mxu0
        %v613 = vadd.f32 %v434, %v612
        %v614 = vpop.f32.mrb[0].mxu0
        %v615 = vadd.f32 %v434, %v614
        %616 = vmatprep.mubr.f32.mxu0 0.0
        %617 = vmatmul.mubr.f32.gmra.mrb[0].mxu0 %v497
        %v618 = vpop.f32.mrb[0].mxu0
        %v619 = vadd.f32 %v439, %v618
        %v620 = vpop.f32.mrb[0].mxu0
        %v621 = vadd.f32 %v439, %v620
        %622 = vdwg.mxu0
        %623 = vmatprep.subr.mxu0 %v506
        %624 = vmatpush1.msra.mxu0 %v504
        %625 = vmatprep.subr.mxu0 0.0
        %626 = vmatpush1.msra.mxu0 0.0
        %627 = vmatprep.subr.mxu0 0.0
        %628 = vmatpush1.msra.mxu0 0.0
        %629 = vmatprep.subr.mxu0 0.0
        %630 = vmatpush1.msra.mxu0 0.0
        %631 = vmatprep.subr.mxu0 0.0
        %632 = vmatpush1.msra.mxu0 0.0
        %633 = vmatprep.subr.mxu0 0.0
        %634 = vmatpush1.msra.mxu0 0.0
        %635 = vmatprep.subr.mxu0 0.0
        %636 = vmatpush1.msra.mxu0 0.0
        %637 = vmatprep.subr.mxu0 0.0
        %638 = vmatpush1.msra.mxu0 0.0
        %639 = vmatprep.subr.mxu0 0.0
        %640 = vmatpush1.msra.mxu0 0.0
        %641 = vmatprep.subr.mxu0 0.0
        %642 = vmatpush1.msra.mxu0 0.0
        %643 = vmatprep.subr.mxu0 0.0
        %644 = vmatpush1.msra.mxu0 0.0
        %645 = vmatprep.subr.mxu0 0.0
        %646 = vmatpush1.msra.mxu0 0.0
        %647 = vmatprep.subr.mxu0 0.0
        %648 = vmatpush1.msra.mxu0 0.0
        %649 = vmatprep.subr.mxu0 0.0
        %650 = vmatpush1.msra.mxu0 0.0
        %651 = vmatprep.subr.mxu0 0.0
        %652 = vmatpush1.msra.mxu0 0.0
        %653 = vmatprep.subr.mxu0 0.0
        %654 = vmatpush1.msra.mxu0 0.0
        %655 = vmatprep.subr.mxu0 0.0
        %656 = vmatpush1.msra.mxu0 0.0
        %657 = vmatprep.subr.mxu0 0.0
        %658 = vmatpush1.msra.mxu0 0.0
        %659 = vmatprep.subr.mxu0 0.0
        %660 = vmatpush1.msra.mxu0 0.0
        %661 = vmatprep.subr.mxu0 0.0
        %662 = vmatpush1.msra.mxu0 0.0
        %663 = vmatprep.subr.mxu0 0.0
        %664 = vmatpush1.msra.mxu0 0.0
        %665 = vmatprep.subr.mxu0 0.0
        %666 = vmatpush1.msra.mxu0 0.0
        %667 = vmatprep.subr.mxu0 0.0
        %668 = vmatpush1.msra.mxu0 0.0
        %669 = vmatprep.subr.mxu0 0.0
        %670 = vmatpush1.msra.mxu0 0.0
        %671 = vmatprep.subr.mxu0 0.0
        %672 = vmatpush1.msra.mxu0 0.0
        %673 = vmatprep.subr.mxu0 0.0
        %674 = vmatpush1.msra.mxu0 0.0
        %675 = vmatprep.subr.mxu0 0.0
        %676 = vmatpush1.msra.mxu0 0.0
        %677 = vmatprep.subr.mxu0 0.0
        %678 = vmatpush1.msra.mxu0 0.0
        %679 = vmatprep.subr.mxu0 0.0
        %680 = vmatpush1.msra.mxu0 0.0
        %681 = vmatprep.subr.mxu0 0.0
        %682 = vmatpush1.msra.mxu0 0.0
        %683 = vmatprep.subr.mxu0 0.0
        %684 = vmatpush1.msra.mxu0 0.0
        %685 = vmatprep.subr.mxu0 0.0
        %686 = vmatpush1.msra.mxu0 0.0
        %687 = vmatprep.mubr.f32.mxu0 0.0
        %688 = vmatmul.mubr.f32.gmra.mrb[0].mxu0 %v479
        %v689 = vpop.f32.mrb[0].mxu0
        %v690 = vadd.f32 %v409, %v689
        %v691 = vpop.f32.mrb[0].mxu0
        %v692 = vadd.f32 %v409, %v691
        %693 = vmatprep.mubr.f32.mxu0 0.0
        %694 = vmatmul.mubr.f32.gmra.mrb[0].mxu0 %v482
        %v695 = vpop.f32.mrb[0].mxu0
        %v696 = vadd.f32 %v414, %v695
        %v697 = vpop.f32.mrb[0].mxu0
        %v698 = vadd.f32 %v414, %v697
        %699 = vmatprep.mubr.f32.mxu0 0.0
        %700 = vmatmul.mubr.f32.gmra.mrb[0].mxu0 %v485
        %v701 = vpop.f32.mrb[0].mxu0
        %v702 = vadd.f32 %v419, %v701
        %v703 = vpop.f32.mrb[0].mxu0
        %v704 = vadd.f32 %v419, %v703
        %705 = vmatprep.mubr.f32.mxu0 0.0
        %706 = vmatmul.mubr.f32.gmra.mrb[0].mxu0 %v488
        %v707 = vpop.f32.mrb[0].mxu0
        %v708 = vadd.f32 %v424, %v707
        %v709 = vpop.f32.mrb[0].mxu0
        %v710 = vadd.f32 %v424, %v709
        %711 = vmatprep.mubr.f32.mxu0 0.0
        %712 = vmatmul.mubr.f32.gmra.mrb[0].mxu0 %v491
        %v713 = vpop.f32.mrb[0].mxu0
        %v714 = vadd.f32 %v429, %v713
        %v715 = vpop.f32.mrb[0].mxu0
        %v716 = vadd.f32 %v429, %v715
        %717 = vmatprep.mubr.f32.mxu0 0.0
        %718 = vmatmul.mubr.f32.gmra.mrb[0].mxu0 %v494
        %v719 = vpop.f32.mrb[0].mxu0
        %v720 = vadd.f32 %v434, %v719
        %v721 = vpop.f32.mrb[0].mxu0
        %v722 = vadd.f32 %v434, %v721
        %723 = vmatprep.mubr.f32.mxu0 0.0
        %724 = vmatmul.mubr.f32.gmra.mrb[0].mxu0 %v497
        %v725 = vpop.f32.mrb[0].mxu0
        %v726 = vadd.f32 %v439, %v725
        %v727 = vpop.f32.mrb[0].mxu0
        %v728 = vadd.f32 %v439, %v727
        %729 = vdwg.mxu0
        %730 = vmatprep.subr.mxu0 %v510
        %731 = vmatpush1.msra.mxu0 %v508
        %732 = vmatprep.subr.mxu0 0.0
        %733 = vmatpush1.msra.mxu0 0.0
        %734 = vmatprep.subr.mxu0 0.0
        %735 = vmatpush1.msra.mxu0 0.0
        %736 = vmatprep.subr.mxu0 0.0
        %737 = vmatpush1.msra.mxu0 0.0
        %738 = vmatprep.subr.mxu0 0.0
        %739 = vmatpush1.msra.mxu0 0.0
        %740 = vmatprep.subr.mxu0 0.0
        %741 = vmatpush1.msra.mxu0 0.0
        %742 = vmatprep.subr.mxu0 0.0
        %743 = vmatpush1.msra.mxu0 0.0
        %744 = vmatprep.subr.mxu0 0.0
        %745 = vmatpush1.msra.mxu0 0.0
        %746 = vmatprep.subr.mxu0 0.0
        %747 = vmatpush1.msra.mxu0 0.0
        %748 = vmatprep.subr.mxu0 0.0
        %749 = vmatpush1.msra.mxu0 0.0
        %750 = vmatprep.subr.mxu0 0.0
        %751 = vmatpush1.msra.mxu0 0.0
        %752 = vmatprep.subr.mxu0 0.0
        %753 = vmatpush1.msra.mxu0 0.0
        %754 = vmatprep.subr.mxu0 0.0
        %755 = vmatpush1.msra.mxu0 0.0
        %756 = vmatprep.subr.mxu0 0.0
        %757 = vmatpush1.msra.mxu0 0.0
        %758 = vmatprep.subr.mxu0 0.0
        %759 = vmatpush1.msra.mxu0 0.0
        %760 = vmatprep.subr.mxu0 0.0
        %761 = vmatpush1.msra.mxu0 0.0
        %762 = vmatprep.subr.mxu0 0.0
        %763 = vmatpush1.msra.mxu0 0.0
        %764 = vmatprep.subr.mxu0 0.0
        %765 = vmatpush1.msra.mxu0 0.0
        %766 = vmatprep.subr.mxu0 0.0
        %767 = vmatpush1.msra.mxu0 0.0
        %768 = vmatprep.subr.mxu0 0.0
        %769 = vmatpush1.msra.mxu0 0.0
        %770 = vmatprep.subr.mxu0 0.0
        %771 = vmatpush1.msra.mxu0 0.0
        %772 = vmatprep.subr.mxu0 0.0
        %773 = vmatpush1.msra.mxu0 0.0
        %774 = vmatprep.subr.mxu0 0.0
        %775 = vmatpush1.msra.mxu0 0.0
        %776 = vmatprep.subr.mxu0 0.0
        %777 = vmatpush1.msra.mxu0 0.0
        %778 = vmatprep.subr.mxu0 0.0
        %779 = vmatpush1.msra.mxu0 0.0
        %780 = vmatprep.subr.mxu0 0.0
        %781 = vmatpush1.msra.mxu0 0.0
        %782 = vmatprep.subr.mxu0 0.0
        %783 = vmatpush1.msra.mxu0 0.0
        %784 = vmatprep.subr.mxu0 0.0
        %785 = vmatpush1.msra.mxu0 0.0
        %786 = vmatprep.subr.mxu0 0.0
        %787 = vmatpush1.msra.mxu0 0.0
        %788 = vmatprep.subr.mxu0 0.0
        %789 = vmatpush1.msra.mxu0 0.0
        %790 = vmatprep.subr.mxu0 0.0
        %791 = vmatpush1.msra.mxu0 0.0
        %792 = vmatprep.subr.mxu0 0.0
        %793 = vmatpush1.msra.mxu0 0.0
        %794 = vmatprep.mubr.f32.mxu0 0.0
        %795 = vmatmul.mubr.f32.gmra.mrb[0].mxu0 %v479
        %v796 = vpop.f32.mrb[0].mxu0
        %v797 = vadd.f32 %v409, %v796
        %v798 = vpop.f32.mrb[0].mxu0
        %v799 = vadd.f32 %v409, %v798
        %800 = vmatprep.mubr.f32.mxu0 0.0
        %801 = vmatmul.mubr.f32.gmra.mrb[0].mxu0 %v482
        %v802 = vpop.f32.mrb[0].mxu0
        %v803 = vadd.f32 %v414, %v802
        %v804 = vpop.f32.mrb[0].mxu0
        %v805 = vadd.f32 %v414, %v804
        %806 = vmatprep.mubr.f32.mxu0 0.0
        %807 = vmatmul.mubr.f32.gmra.mrb[0].mxu0 %v485
        %v808 = vpop.f32.mrb[0].mxu0
        %v809 = vadd.f32 %v419, %v808
        %v810 = vpop.f32.mrb[0].mxu0
        %v811 = vadd.f32 %v419, %v810
        %812 = vmatprep.mubr.f32.mxu0 0.0
        %813 = vmatmul.mubr.f32.gmra.mrb[0].mxu0 %v488
        %v814 = vpop.f32.mrb[0].mxu0
        %v815 = vadd.f32 %v424, %v814
        %v816 = vpop.f32.mrb[0].mxu0
        %v817 = vadd.f32 %v424, %v816
        %818 = vmatprep.mubr.f32.mxu0 0.0
        %819 = vmatmul.mubr.f32.gmra.mrb[0].mxu0 %v491
        %v820 = vpop.f32.mrb[0].mxu0
        %v821 = vadd.f32 %v429, %v820
        %v822 = vpop.f32.mrb[0].mxu0
        %v823 = vadd.f32 %v429, %v822
        %824 = vmatprep.mubr.f32.mxu0 0.0
        %825 = vmatmul.mubr.f32.gmra.mrb[0].mxu0 %v494
        %v826 = vpop.f32.mrb[0].mxu0
        %v827 = vadd.f32 %v434, %v826
        %v828 = vpop.f32.mrb[0].mxu0
        %v829 = vadd.f32 %v434, %v828
        %830 = vmatprep.mubr.f32.mxu0 0.0
        %831 = vmatmul.mubr.f32.gmra.mrb[0].mxu0 %v497
        %v832 = vpop.f32.mrb[0].mxu0
        %v833 = vadd.f32 %v439, %v832
        %v834 = vpop.f32.mrb[0].mxu0
        %v835 = vadd.f32 %v439, %v834
        %836 = vdwg.mxu0
        %837 = vmatprep.subr.mxu0 %v514
        %838 = vmatpush1.msra.mxu0 %v512
        %839 = vmatprep.subr.mxu0 0.0
        %840 = vmatpush1.msra.mxu0 0.0
        %841 = vmatprep.subr.mxu0 0.0
        %842 = vmatpush1.msra.mxu0 0.0
        %843 = vmatprep.subr.mxu0 0.0
        %844 = vmatpush1.msra.mxu0 0.0
        %845 = vmatprep.subr.mxu0 0.0
        %846 = vmatpush1.msra.mxu0 0.0
        %847 = vmatprep.subr.mxu0 0.0
        %848 = vmatpush1.msra.mxu0 0.0
        %849 = vmatprep.subr.mxu0 0.0
        %850 = vmatpush1.msra.mxu0 0.0
        %851 = vmatprep.subr.mxu0 0.0
        %852 = vmatpush1.msra.mxu0 0.0
        %853 = vmatprep.subr.mxu0 0.0
        %854 = vmatpush1.msra.mxu0 0.0
        %855 = vmatprep.subr.mxu0 0.0
        %856 = vmatpush1.msra.mxu0 0.0
        %857 = vmatprep.subr.mxu0 0.0
        %858 = vmatpush1.msra.mxu0 0.0
        %859 = vmatprep.subr.mxu0 0.0
        %860 = vmatpush1.msra.mxu0 0.0
        %861 = vmatprep.subr.mxu0 0.0
        %862 = vmatpush1.msra.mxu0 0.0
        %863 = vmatprep.subr.mxu0 0.0
        %864 = vmatpush1.msra.mxu0 0.0
        %865 = vmatprep.subr.mxu0 0.0
        %866 = vmatpush1.msra.mxu0 0.0
        %867 = vmatprep.subr.mxu0 0.0
        %868 = vmatpush1.msra.mxu0 0.0
        %869 = vmatprep.subr.mxu0 0.0
        %870 = vmatpush1.msra.mxu0 0.0
        %871 = vmatprep.subr.mxu0 0.0
        %872 = vmatpush1.msra.mxu0 0.0
        %873 = vmatprep.subr.mxu0 0.0
        %874 = vmatpush1.msra.mxu0 0.0
        %875 = vmatprep.subr.mxu0 0.0
        %876 = vmatpush1.msra.mxu0 0.0
        %877 = vmatprep.subr.mxu0 0.0
        %878 = vmatpush1.msra.mxu0 0.0
        %879 = vmatprep.subr.mxu0 0.0
        %880 = vmatpush1.msra.mxu0 0.0
        %881 = vmatprep.subr.mxu0 0.0
        %882 = vmatpush1.msra.mxu0 0.0
        %883 = vmatprep.subr.mxu0 0.0
        %884 = vmatpush1.msra.mxu0 0.0
        %885 = vmatprep.subr.mxu0 0.0
        %886 = vmatpush1.msra.mxu0 0.0
        %887 = vmatprep.subr.mxu0 0.0
        %888 = vmatpush1.msra.mxu0 0.0
        %889 = vmatprep.subr.mxu0 0.0
        %890 = vmatpush1.msra.mxu0 0.0
        %891 = vmatprep.subr.mxu0 0.0
        %892 = vmatpush1.msra.mxu0 0.0
        %893 = vmatprep.subr.mxu0 0.0
        %894 = vmatpush1.msra.mxu0 0.0
        %895 = vmatprep.subr.mxu0 0.0
        %896 = vmatpush1.msra.mxu0 0.0
        %897 = vmatprep.subr.mxu0 0.0
        %898 = vmatpush1.msra.mxu0 0.0
        %899 = vmatprep.subr.mxu0 0.0
        %900 = vmatpush1.msra.mxu0 0.0
        %901 = vmatprep.mubr.f32.mxu0 0.0
        %902 = vmatmul.mubr.f32.gmra.mrb[0].mxu0 %v479
        %v903 = vpop.f32.mrb[0].mxu0
        %v904 = vadd.f32 %v409, %v903
        %v905 = vpop.f32.mrb[0].mxu0
        %v906 = vadd.f32 %v409, %v905
        %907 = vmatprep.mubr.f32.mxu0 0.0
        %908 = vmatmul.mubr.f32.gmra.mrb[0].mxu0 %v482
        %v909 = vpop.f32.mrb[0].mxu0
        %v910 = vadd.f32 %v414, %v909
        %v911 = vpop.f32.mrb[0].mxu0
        %v912 = vadd.f32 %v414, %v911
        %913 = vmatprep.mubr.f32.mxu0 0.0
        %914 = vmatmul.mubr.f32.gmra.mrb[0].mxu0 %v485
        %v915 = vpop.f32.mrb[0].mxu0
        %v916 = vadd.f32 %v419, %v915
        %v917 = vpop.f32.mrb[0].mxu0
        %v918 = vadd.f32 %v419, %v917
        %919 = vmatprep.mubr.f32.mxu0 0.0
        %920 = vmatmul.mubr.f32.gmra.mrb[0].mxu0 %v488
        %v921 = vpop.f32.mrb[0].mxu0
        %v922 = vadd.f32 %v424, %v921
        %v923 = vpop.f32.mrb[0].mxu0
        %v924 = vadd.f32 %v424, %v923
        %925 = vmatprep.mubr.f32.mxu0 0.0
        %926 = vmatmul.mubr.f32.gmra.mrb[0].mxu0 %v491
        %v927 = vpop.f32.mrb[0].mxu0
        %v928 = vadd.f32 %v429, %v927
        %v929 = vpop.f32.mrb[0].mxu0
        %v930 = vadd.f32 %v429, %v929
        %931 = vmatprep.mubr.f32.mxu0 0.0
        %932 = vmatmul.mubr.f32.gmra.mrb[0].mxu0 %v494
        %v933 = vpop.f32.mrb[0].mxu0
        %v934 = vadd.f32 %v434, %v933
        %v935 = vpop.f32.mrb[0].mxu0
        %v936 = vadd.f32 %v434, %v935
        %937 = vmatprep.mubr.f32.mxu0 0.0
        %938 = vmatmul.mubr.f32.gmra.mrb[0].mxu0 %v497
        %v939 = vpop.f32.mrb[0].mxu0
        %v940 = vadd.f32 %v439, %v939
        %v941 = vpop.f32.mrb[0].mxu0
        %v942 = vadd.f32 %v439, %v941
        %943 = vdwg.mxu0
        %v944 = vtanh.pop %v583
        %v945 = vtanh.pop %v585
        %v946 = vtanh.pop %v690
        %v947 = vtanh.pop %v692
        %v948 = vtanh.pop %v797
        %v949 = vtanh.pop %v799
        %v950 = vtanh.pop %v904
        %v951 = vtanh.pop %v906
        %v952 = vtanh.pop %v589
        %v953 = vtanh.pop %v591
        %v954 = vtanh.pop %v696
        %v955 = vtanh.pop %v698
        %v956 = vtanh.pop %v803
        %v957 = vtanh.pop %v805
        %v958 = vtanh.pop %v910
        %v959 = vtanh.pop %v912
        %v960 = vtanh.pop %v595
        %v961 = vtanh.pop %v597
        %v962 = vtanh.pop %v702
        %v963 = vtanh.pop %v704
        %v964 = vtanh.pop %v809
        %v965 = vtanh.pop %v811
        %v966 = vtanh.pop %v916
        %v967 = vtanh.pop %v918
        %v968 = vtanh.pop %v601
        %v969 = vtanh.pop %v603
        %v970 = vtanh.pop %v708
        %v971 = vtanh.pop %v710
        %v972 = vtanh.pop %v815
        %v973 = vtanh.pop %v817
        %v974 = vtanh.pop %v922
        %v975 = vtanh.pop %v924
        %v976 = vtanh.pop %v607
        %v977 = vtanh.pop %v609
        %v978 = vtanh.pop %v714
        %v979 = vtanh.pop %v716
        %v980 = vtanh.pop %v821
        %v981 = vtanh.pop %v823
        %v982 = vtanh.pop %v928
        %v983 = vtanh.pop %v930
        %v984 = vtanh.pop %v613
        %v985 = vtanh.pop %v615
        %v986 = vtanh.pop %v720
        %v987 = vtanh.pop %v722
        %v988 = vtanh.pop %v827
        %v989 = vtanh.pop %v829
        %v990 = vtanh.pop %v934
        %v991 = vtanh.pop %v936
        %v992 = vtanh.pop %v619
        %v993 = vtanh.pop %v621
        %v994 = vtanh.pop %v726
        %v995 = vtanh.pop %v728
        %v996 = vtanh.pop %v833
        %v997 = vtanh.pop %v835
        %v998 = vtanh.pop %v940
        %v999 = vtanh.pop %v942
        %v1000 = vld [vmem:[%s3] sm:$0xff]
        %v1001 = vld [vmem:[%s3 + $0x8] sm:$0xff]
        %v1002 = vld [vmem:[%s3 + $0x10] sm:$0xff]
        %v1003 = vld [vmem:[%s3 + $0x18] sm:$0xff]
        %v1004 = vld [vmem:[%s3 + $0x20] sm:$0xff]
        %v1005 = vld [vmem:[%s3 + $0x28] sm:$0xff]
        %v1006 = vld [vmem:[%s3 + $0x30] sm:$0x3]
        %v1007 = vld [vmem:[%s4] sm:$0xff]
        %v1008 = vld [vmem:[%s4 + $0x8] sm:$0xff]
        %v1009 = vld [vmem:[%s4 + $0x10] sm:$0xff]
        %v1010 = vld [vmem:[%s4 + $0x18] sm:$0xff]
        %v1011 = vld [vmem:[%s4 + $0x20] sm:$0xff]
        %v1012 = vld [vmem:[%s4 + $0x28] sm:$0xff]
        %v1013 = vld [vmem:[%s4 + $0x30] sm:$0x3]
        %1015 = vset.pattern.permute.xlu0 0
        %1016 = vperm.xlu0 %1015, %v1007
        %v1017 = vpop.permute.xlu0 %1016
        %1020 = vset.pattern.permute.xlu0 0
        %1021 = vperm.xlu0 %1020, %v1008
        %v1022 = vpop.permute.xlu0 %1021
        %1025 = vset.pattern.permute.xlu0 0
        %1026 = vperm.xlu0 %1025, %v1009
        %v1027 = vpop.permute.xlu0 %1026
        %1030 = vset.pattern.permute.xlu0 0
        %1031 = vperm.xlu0 %1030, %v1010
        %v1032 = vpop.permute.xlu0 %1031
        %1035 = vset.pattern.permute.xlu0 0
        %1036 = vperm.xlu0 %1035, %v1011
        %v1037 = vpop.permute.xlu0 %1036
        %1040 = vset.pattern.permute.xlu0 0
        %1041 = vperm.xlu0 %1040, %v1012
        %v1042 = vpop.permute.xlu0 %1041
        %1045 = vset.pattern.permute.xlu0 0
        %1046 = vperm.xlu0 %1045, %v1013
        %v1047 = vpop.permute.xlu0 %1046
        %vm1049 = vcmask 408576
        %v1051 = vsel %vm1049, %v1000, 0
        %v1054 = vsel %vm1049, %v1001, 0
        %v1057 = vsel %vm1049, %v1002, 0
        %v1060 = vsel %vm1049, %v1003, 0
        %v1063 = vsel %vm1049, %v1004, 0
        %v1066 = vsel %vm1049, %v1005, 0
        %v1069 = vsel %vm1049, %v1006, 0
        %v1072 = vsel %vm499, %v992, 0
        %v1075 = vsel %vm499, %v993, 0
        %v1078 = vsel %vm499, %v994, 0
        %v1081 = vsel %vm499, %v995, 0
        %v1084 = vsel %vm499, %v996, 0
        %v1087 = vsel %vm499, %v997, 0
        %v1090 = vsel %vm499, %v998, 0
        %v1093 = vsel %vm499, %v999, 0
        %1095 = vmatprep.subr.mxu0 %v945
        %1096 = vmatpush1.msra.mxu0 %v944
        %1097 = vmatprep.subr.mxu0 %v953
        %1098 = vmatpush1.msra.mxu0 %v952
        %1099 = vmatprep.subr.mxu0 %v961
        %1100 = vmatpush1.msra.mxu0 %v960
        %1101 = vmatprep.subr.mxu0 %v969
        %1102 = vmatpush1.msra.mxu0 %v968
        %1103 = vmatprep.subr.mxu0 %v977
        %1104 = vmatpush1.msra.mxu0 %v976
        %1105 = vmatprep.subr.mxu0 %v985
        %1106 = vmatpush1.msra.mxu0 %v984
        %1107 = vmatprep.subr.mxu0 %v1075
        %1108 = vmatpush1.msra.mxu0 %v1072
        %1109 = vmatprep.subr.mxu0 0.0
        %1110 = vmatpush1.msra.mxu0 0.0
        %1111 = vmatprep.subr.mxu0 0.0
        %1112 = vmatpush1.msra.mxu0 0.0
        %1113 = vmatprep.subr.mxu0 0.0
        %1114 = vmatpush1.msra.mxu0 0.0
        %1115 = vmatprep.subr.mxu0 0.0
        %1116 = vmatpush1.msra.mxu0 0.0
        %1117 = vmatprep.subr.mxu0 0.0
        %1118 = vmatpush1.msra.mxu0 0.0
        %1119 = vmatprep.subr.mxu0 0.0
        %1120 = vmatpush1.msra.mxu0 0.0
        %1121 = vmatprep.subr.mxu0 0.0
        %1122 = vmatpush1.msra.mxu0 0.0
        %1123 = vmatprep.subr.mxu0 0.0
        %1124 = vmatpush1.msra.mxu0 0.0
        %1125 = vmatprep.subr.mxu0 0.0
        %1126 = vmatpush1.msra.mxu0 0.0
        %1127 = vmatprep.subr.mxu0 0.0
        %1128 = vmatpush1.msra.mxu0 0.0
        %1129 = vmatprep.subr.mxu0 0.0
        %1130 = vmatpush1.msra.mxu0 0.0
        %1131 = vmatprep.subr.mxu0 0.0
        %1132 = vmatpush1.msra.mxu0 0.0
        %1133 = vmatprep.subr.mxu0 0.0
        %1134 = vmatpush1.msra.mxu0 0.0
        %1135 = vmatprep.subr.mxu0 0.0
        %1136 = vmatpush1.msra.mxu0 0.0
        %1137 = vmatprep.subr.mxu0 0.0
        %1138 = vmatpush1.msra.mxu0 0.0
        %1139 = vmatprep.subr.mxu0 0.0
        %1140 = vmatpush1.msra.mxu0 0.0
        %1141 = vmatprep.subr.mxu0 0.0
        %1142 = vmatpush1.msra.mxu0 0.0
        %1143 = vmatprep.subr.mxu0 0.0
        %1144 = vmatpush1.msra.mxu0 0.0
        %1145 = vmatprep.subr.mxu0 0.0
        %1146 = vmatpush1.msra.mxu0 0.0
        %1147 = vmatprep.subr.mxu0 0.0
        %1148 = vmatpush1.msra.mxu0 0.0
        %1149 = vmatprep.subr.mxu0 0.0
        %1150 = vmatpush1.msra.mxu0 0.0
        %1151 = vmatprep.subr.mxu0 0.0
        %1152 = vmatpush1.msra.mxu0 0.0
        %1153 = vmatprep.subr.mxu0 0.0
        %1154 = vmatpush1.msra.mxu0 0.0
        %1155 = vmatprep.subr.mxu0 0.0
        %1156 = vmatpush1.msra.mxu0 0.0
        %1157 = vmatprep.subr.mxu0 0.0
        %1158 = vmatpush1.msra.mxu0 0.0
        %1159 = vmatprep.mubr.f32.mxu0 0.0
        %1160 = vmatmul.mubr.f32.gmra.mrb[0].mxu0 %v1051
        %v1161 = vpop.f32.mrb[0].mxu0
        %v1162 = vadd.f32 %v1017, %v1161
        %v1163 = vpop.f32.mrb[0].mxu0
        %v1164 = vadd.f32 %v1017, %v1163
        %1165 = vmatprep.mubr.f32.mxu0 0.0
        %1166 = vmatmul.mubr.f32.gmra.mrb[0].mxu0 %v1054
        %v1167 = vpop.f32.mrb[0].mxu0
        %v1168 = vadd.f32 %v1022, %v1167
        %v1169 = vpop.f32.mrb[0].mxu0
        %v1170 = vadd.f32 %v1022, %v1169
        %1171 = vmatprep.mubr.f32.mxu0 0.0
        %1172 = vmatmul.mubr.f32.gmra.mrb[0].mxu0 %v1057
        %v1173 = vpop.f32.mrb[0].mxu0
        %v1174 = vadd.f32 %v1027, %v1173
        %v1175 = vpop.f32.mrb[0].mxu0
        %v1176 = vadd.f32 %v1027, %v1175
        %1177 = vmatprep.mubr.f32.mxu0 0.0
        %1178 = vmatmul.mubr.f32.gmra.mrb[0].mxu0 %v1060
        %v1179 = vpop.f32.mrb[0].mxu0
        %v1180 = vadd.f32 %v1032, %v1179
        %v1181 = vpop.f32.mrb[0].mxu0
        %v1182 = vadd.f32 %v1032, %v1181
        %1183 = vmatprep.mubr.f32.mxu0 0.0
        %1184 = vmatmul.mubr.f32.gmra.mrb[0].mxu0 %v1063
        %v1185 = vpop.f32.mrb[0].mxu0
        %v1186 = vadd.f32 %v1037, %v1185
        %v1187 = vpop.f32.mrb[0].mxu0
        %v1188 = vadd.f32 %v1037, %v1187
        %1189 = vmatprep.mubr.f32.mxu0 0.0
        %1190 = vmatmul.mubr.f32.gmra.mrb[0].mxu0 %v1066
        %v1191 = vpop.f32.mrb[0].mxu0
        %v1192 = vadd.f32 %v1042, %v1191
        %v1193 = vpop.f32.mrb[0].mxu0
        %v1194 = vadd.f32 %v1042, %v1193
        %1195 = vmatprep.mubr.f32.mxu0 0.0
        %1196 = vmatmul.mubr.f32.gmra.mrb[0].mxu0 %v1069
        %v1197 = vpop.f32.mrb[0].mxu0
        %v1198 = vadd.f32 %v1047, %v1197
        %v1199 = vpop.f32.mrb[0].mxu0
        %v1200 = vadd.f32 %v1047, %v1199
        %1201 = vdwg.mxu0
        %1202 = vmatprep.subr.mxu0 %v947
        %1203 = vmatpush1.msra.mxu0 %v946
        %1204 = vmatprep.subr.mxu0 %v955
        %1205 = vmatpush1.msra.mxu0 %v954
        %1206 = vmatprep.subr.mxu0 %v963
        %1207 = vmatpush1.msra.mxu0 %v962
        %1208 = vmatprep.subr.mxu0 %v971
        %1209 = vmatpush1.msra.mxu0 %v970
        %1210 = vmatprep.subr.mxu0 %v979
        %1211 = vmatpush1.msra.mxu0 %v978
        %1212 = vmatprep.subr.mxu0 %v987
        %1213 = vmatpush1.msra.mxu0 %v986
        %1214 = vmatprep.subr.mxu0 %v1081
        %1215 = vmatpush1.msra.mxu0 %v1078
        %1216 = vmatprep.subr.mxu0 0.0
        %1217 = vmatpush1.msra.mxu0 0.0
        %1218 = vmatprep.subr.mxu0 0.0
        %1219 = vmatpush1.msra.mxu0 0.0
        %1220 = vmatprep.subr.mxu0 0.0
        %1221 = vmatpush1.msra.mxu0 0.0
        %1222 = vmatprep.subr.mxu0 0.0
        %1223 = vmatpush1.msra.mxu0 0.0
        %1224 = vmatprep.subr.mxu0 0.0
        %1225 = vmatpush1.msra.mxu0 0.0
        %1226 = vmatprep.subr.mxu0 0.0
        %1227 = vmatpush1.msra.mxu0 0.0
        %1228 = vmatprep.subr.mxu0 0.0
        %1229 = vmatpush1.msra.mxu0 0.0
        %1230 = vmatprep.subr.mxu0 0.0
        %1231 = vmatpush1.msra.mxu0 0.0
        %1232 = vmatprep.subr.mxu0 0.0
        %1233 = vmatpush1.msra.mxu0 0.0
        %1234 = vmatprep.subr.mxu0 0.0
        %1235 = vmatpush1.msra.mxu0 0.0
        %1236 = vmatprep.subr.mxu0 0.0
        %1237 = vmatpush1.msra.mxu0 0.0
        %1238 = vmatprep.subr.mxu0 0.0
        %1239 = vmatpush1.msra.mxu0 0.0
        %1240 = vmatprep.subr.mxu0 0.0
        %1241 = vmatpush1.msra.mxu0 0.0
        %1242 = vmatprep.subr.mxu0 0.0
        %1243 = vmatpush1.msra.mxu0 0.0
        %1244 = vmatprep.subr.mxu0 0.0
        %1245 = vmatpush1.msra.mxu0 0.0
        %1246 = vmatprep.subr.mxu0 0.0
        %1247 = vmatpush1.msra.mxu0 0.0
        %1248 = vmatprep.subr.mxu0 0.0
        %1249 = vmatpush1.msra.mxu0 0.0
        %1250 = vmatprep.subr.mxu0 0.0
        %1251 = vmatpush1.msra.mxu0 0.0
        %1252 = vmatprep.subr.mxu0 0.0
        %1253 = vmatpush1.msra.mxu0 0.0
        %1254 = vmatprep.subr.mxu0 0.0
        %1255 = vmatpush1.msra.mxu0 0.0
        %1256 = vmatprep.subr.mxu0 0.0
        %1257 = vmatpush1.msra.mxu0 0.0
        %1258 = vmatprep.subr.mxu0 0.0
        %1259 = vmatpush1.msra.mxu0 0.0
        %1260 = vmatprep.subr.mxu0 0.0
        %1261 = vmatpush1.msra.mxu0 0.0
        %1262 = vmatprep.subr.mxu0 0.0
        %1263 = vmatpush1.msra.mxu0 0.0
        %1264 = vmatprep.subr.mxu0 0.0
        %1265 = vmatpush1.msra.mxu0 0.0
        %1266 = vmatprep.mubr.f32.mxu0 0.0
        %1267 = vmatmul.mubr.f32.gmra.mrb[0].mxu0 %v1051
        %v1268 = vpop.f32.mrb[0].mxu0
        %v1269 = vadd.f32 %v1017, %v1268
        %v1270 = vpop.f32.mrb[0].mxu0
        %v1271 = vadd.f32 %v1017, %v1270
        %1272 = vmatprep.mubr.f32.mxu0 0.0
        %1273 = vmatmul.mubr.f32.gmra.mrb[0].mxu0 %v1054
        %v1274 = vpop.f32.mrb[0].mxu0
        %v1275 = vadd.f32 %v1022, %v1274
        %v1276 = vpop.f32.mrb[0].mxu0
        %v1277 = vadd.f32 %v1022, %v1276
        %1278 = vmatprep.mubr.f32.mxu0 0.0
        %1279 = vmatmul.mubr.f32.gmra.mrb[0].mxu0 %v1057
        %v1280 = vpop.f32.mrb[0].mxu0
        %v1281 = vadd.f32 %v1027, %v1280
        %v1282 = vpop.f32.mrb[0].mxu0
        %v1283 = vadd.f32 %v1027, %v1282
        %1284 = vmatprep.mubr.f32.mxu0 0.0
        %1285 = vmatmul.mubr.f32.gmra.mrb[0].mxu0 %v1060
        %v1286 = vpop.f32.mrb[0].mxu0
        %v1287 = vadd.f32 %v1032, %v1286
        %v1288 = vpop.f32.mrb[0].mxu0
        %v1289 = vadd.f32 %v1032, %v1288
        %1290 = vmatprep.mubr.f32.mxu0 0.0
        %1291 = vmatmul.mubr.f32.gmra.mrb[0].mxu0 %v1063
        %v1292 = vpop.f32.mrb[0].mxu0
        %v1293 = vadd.f32 %v1037, %v1292
        %v1294 = vpop.f32.mrb[0].mxu0
        %v1295 = vadd.f32 %v1037, %v1294
        %1296 = vmatprep.mubr.f32.mxu0 0.0
        %1297 = vmatmul.mubr.f32.gmra.mrb[0].mxu0 %v1066
        %v1298 = vpop.f32.mrb[0].mxu0
        %v1299 = vadd.f32 %v1042, %v1298
        %v1300 = vpop.f32.mrb[0].mxu0
        %v1301 = vadd.f32 %v1042, %v1300
        %1302 = vmatprep.mubr.f32.mxu0 0.0
        %1303 = vmatmul.mubr.f32.gmra.mrb[0].mxu0 %v1069
        %v1304 = vpop.f32.mrb[0].mxu0
        %v1305 = vadd.f32 %v1047, %v1304
        %v1306 = vpop.f32.mrb[0].mxu0
        %v1307 = vadd.f32 %v1047, %v1306
        %1308 = vdwg.mxu0
        %1309 = vmatprep.subr.mxu0 %v949
        %1310 = vmatpush1.msra.mxu0 %v948
        %1311 = vmatprep.subr.mxu0 %v957
        %1312 = vmatpush1.msra.mxu0 %v956
        %1313 = vmatprep.subr.mxu0 %v965
        %1314 = vmatpush1.msra.mxu0 %v964
        %1315 = vmatprep.subr.mxu0 %v973
        %1316 = vmatpush1.msra.mxu0 %v972
        %1317 = vmatprep.subr.mxu0 %v981
        %1318 = vmatpush1.msra.mxu0 %v980
        %1319 = vmatprep.subr.mxu0 %v989
        %1320 = vmatpush1.msra.mxu0 %v988
        %1321 = vmatprep.subr.mxu0 %v1087
        %1322 = vmatpush1.msra.mxu0 %v1084
        %1323 = vmatprep.subr.mxu0 0.0
        %1324 = vmatpush1.msra.mxu0 0.0
        %1325 = vmatprep.subr.mxu0 0.0
        %1326 = vmatpush1.msra.mxu0 0.0
        %1327 = vmatprep.subr.mxu0 0.0
        %1328 = vmatpush1.msra.mxu0 0.0
        %1329 = vmatprep.subr.mxu0 0.0
        %1330 = vmatpush1.msra.mxu0 0.0
        %1331 = vmatprep.subr.mxu0 0.0
        %1332 = vmatpush1.msra.mxu0 0.0
        %1333 = vmatprep.subr.mxu0 0.0
        %1334 = vmatpush1.msra.mxu0 0.0
        %1335 = vmatprep.subr.mxu0 0.0
        %1336 = vmatpush1.msra.mxu0 0.0
        %1337 = vmatprep.subr.mxu0 0.0
        %1338 = vmatpush1.msra.mxu0 0.0
        %1339 = vmatprep.subr.mxu0 0.0
        %1340 = vmatpush1.msra.mxu0 0.0
        %1341 = vmatprep.subr.mxu0 0.0
        %1342 = vmatpush1.msra.mxu0 0.0
        %1343 = vmatprep.subr.mxu0 0.0
        %1344 = vmatpush1.msra.mxu0 0.0
        %1345 = vmatprep.subr.mxu0 0.0
        %1346 = vmatpush1.msra.mxu0 0.0
        %1347 = vmatprep.subr.mxu0 0.0
        %1348 = vmatpush1.msra.mxu0 0.0
        %1349 = vmatprep.subr.mxu0 0.0
        %1350 = vmatpush1.msra.mxu0 0.0
        %1351 = vmatprep.subr.mxu0 0.0
        %1352 = vmatpush1.msra.mxu0 0.0
        %1353 = vmatprep.subr.mxu0 0.0
        %1354 = vmatpush1.msra.mxu0 0.0
        %1355 = vmatprep.subr.mxu0 0.0
        %1356 = vmatpush1.msra.mxu0 0.0
        %1357 = vmatprep.subr.mxu0 0.0
        %1358 = vmatpush1.msra.mxu0 0.0
        %1359 = vmatprep.subr.mxu0 0.0
        %1360 = vmatpush1.msra.mxu0 0.0
        %1361 = vmatprep.subr.mxu0 0.0
        %1362 = vmatpush1.msra.mxu0 0.0
        %1363 = vmatprep.subr.mxu0 0.0
        %1364 = vmatpush1.msra.mxu0 0.0
        %1365 = vmatprep.subr.mxu0 0.0
        %1366 = vmatpush1.msra.mxu0 0.0
        %1367 = vmatprep.subr.mxu0 0.0
        %1368 = vmatpush1.msra.mxu0 0.0
        %1369 = vmatprep.subr.mxu0 0.0
        %1370 = vmatpush1.msra.mxu0 0.0
        %1371 = vmatprep.subr.mxu0 0.0
        %1372 = vmatpush1.msra.mxu0 0.0
        %1373 = vmatprep.mubr.f32.mxu0 0.0
        %1374 = vmatmul.mubr.f32.gmra.mrb[0].mxu0 %v1051
        %v1375 = vpop.f32.mrb[0].mxu0
        %v1376 = vadd.f32 %v1017, %v1375
        %v1377 = vpop.f32.mrb[0].mxu0
        %v1378 = vadd.f32 %v1017, %v1377
        %1379 = vmatprep.mubr.f32.mxu0 0.0
        %1380 = vmatmul.mubr.f32.gmra.mrb[0].mxu0 %v1054
        %v1381 = vpop.f32.mrb[0].mxu0
        %v1382 = vadd.f32 %v1022, %v1381
        %v1383 = vpop.f32.mrb[0].mxu0
        %v1384 = vadd.f32 %v1022, %v1383
        %1385 = vmatprep.mubr.f32.mxu0 0.0
        %1386 = vmatmul.mubr.f32.gmra.mrb[0].mxu0 %v1057
        %v1387 = vpop.f32.mrb[0].mxu0
        %v1388 = vadd.f32 %v1027, %v1387
        %v1389 = vpop.f32.mrb[0].mxu0
        %v1390 = vadd.f32 %v1027, %v1389
        %1391 = vmatprep.mubr.f32.mxu0 0.0
        %1392 = vmatmul.mubr.f32.gmra.mrb[0].mxu0 %v1060
        %v1393 = vpop.f32.mrb[0].mxu0
        %v1394 = vadd.f32 %v1032, %v1393
        %v1395 = vpop.f32.mrb[0].mxu0
        %v1396 = vadd.f32 %v1032, %v1395
        %1397 = vmatprep.mubr.f32.mxu0 0.0
        %1398 = vmatmul.mubr.f32.gmra.mrb[0].mxu0 %v1063
        %v1399 = vpop.f32.mrb[0].mxu0
        %v1400 = vadd.f32 %v1037, %v1399
        %v1401 = vpop.f32.mrb[0].mxu0
        %v1402 = vadd.f32 %v1037, %v1401
        %1403 = vmatprep.mubr.f32.mxu0 0.0
        %1404 = vmatmul.mubr.f32.gmra.mrb[0].mxu0 %v1066
        %v1405 = vpop.f32.mrb[0].mxu0
        %v1406 = vadd.f32 %v1042, %v1405
        %v1407 = vpop.f32.mrb[0].mxu0
        %v1408 = vadd.f32 %v1042, %v1407
        %1409 = vmatprep.mubr.f32.mxu0 0.0
        %1410 = vmatmul.mubr.f32.gmra.mrb[0].mxu0 %v1069
        %v1411 = vpop.f32.mrb[0].mxu0
        %v1412 = vadd.f32 %v1047, %v1411
        %v1413 = vpop.f32.mrb[0].mxu0
        %v1414 = vadd.f32 %v1047, %v1413
        %1415 = vdwg.mxu0
        %1416 = vmatprep.subr.mxu0 %v951
        %1417 = vmatpush1.msra.mxu0 %v950
        %1418 = vmatprep.subr.mxu0 %v959
        %1419 = vmatpush1.msra.mxu0 %v958
        %1420 = vmatprep.subr.mxu0 %v967
        %1421 = vmatpush1.msra.mxu0 %v966
        %1422 = vmatprep.subr.mxu0 %v975
        %1423 = vmatpush1.msra.mxu0 %v974
        %1424 = vmatprep.subr.mxu0 %v983
        %1425 = vmatpush1.msra.mxu0 %v982
        %1426 = vmatprep.subr.mxu0 %v991
        %1427 = vmatpush1.msra.mxu0 %v990
        %1428 = vmatprep.subr.mxu0 %v1093
        %1429 = vmatpush1.msra.mxu0 %v1090
        %1430 = vmatprep.subr.mxu0 0.0
        %1431 = vmatpush1.msra.mxu0 0.0
        %1432 = vmatprep.subr.mxu0 0.0
        %1433 = vmatpush1.msra.mxu0 0.0
        %1434 = vmatprep.subr.mxu0 0.0
        %1435 = vmatpush1.msra.mxu0 0.0
        %1436 = vmatprep.subr.mxu0 0.0
        %1437 = vmatpush1.msra.mxu0 0.0
        %1438 = vmatprep.subr.mxu0 0.0
        %1439 = vmatpush1.msra.mxu0 0.0
        %1440 = vmatprep.subr.mxu0 0.0
        %1441 = vmatpush1.msra.mxu0 0.0
        %1442 = vmatprep.subr.mxu0 0.0
        %1443 = vmatpush1.msra.mxu0 0.0
        %1444 = vmatprep.subr.mxu0 0.0
        %1445 = vmatpush1.msra.mxu0 0.0
        %1446 = vmatprep.subr.mxu0 0.0
        %1447 = vmatpush1.msra.mxu0 0.0
        %1448 = vmatprep.subr.mxu0 0.0
        %1449 = vmatpush1.msra.mxu0 0.0
        %1450 = vmatprep.subr.mxu0 0.0
        %1451 = vmatpush1.msra.mxu0 0.0
        %1452 = vmatprep.subr.mxu0 0.0
        %1453 = vmatpush1.msra.mxu0 0.0
        %1454 = vmatprep.subr.mxu0 0.0
        %1455 = vmatpush1.msra.mxu0 0.0
        %1456 = vmatprep.subr.mxu0 0.0
        %1457 = vmatpush1.msra.mxu0 0.0
        %1458 = vmatprep.subr.mxu0 0.0
        %1459 = vmatpush1.msra.mxu0 0.0
        %1460 = vmatprep.subr.mxu0 0.0
        %1461 = vmatpush1.msra.mxu0 0.0
        %1462 = vmatprep.subr.mxu0 0.0
        %1463 = vmatpush1.msra.mxu0 0.0
        %1464 = vmatprep.subr.mxu0 0.0
        %1465 = vmatpush1.msra.mxu0 0.0
        %1466 = vmatprep.subr.mxu0 0.0
        %1467 = vmatpush1.msra.mxu0 0.0
        %1468 = vmatprep.subr.mxu0 0.0
        %1469 = vmatpush1.msra.mxu0 0.0
        %1470 = vmatprep.subr.mxu0 0.0
        %1471 = vmatpush1.msra.mxu0 0.0
        %1472 = vmatprep.subr.mxu0 0.0
        %1473 = vmatpush1.msra.mxu0 0.0
        %1474 = vmatprep.subr.mxu0 0.0
        %1475 = vmatpush1.msra.mxu0 0.0
        %1476 = vmatprep.subr.mxu0 0.0
        %1477 = vmatpush1.msra.mxu0 0.0
        %1478 = vmatprep.subr.mxu0 0.0
        %1479 = vmatpush1.msra.mxu0 0.0
        %1480 = vmatprep.mubr.f32.mxu0 0.0
        %1481 = vmatmul.mubr.f32.gmra.mrb[0].mxu0 %v1051
        %v1482 = vpop.f32.mrb[0].mxu0
        %v1483 = vadd.f32 %v1017, %v1482
        %v1484 = vpop.f32.mrb[0].mxu0
        %v1485 = vadd.f32 %v1017, %v1484
        %1486 = vmatprep.mubr.f32.mxu0 0.0
        %1487 = vmatmul.mubr.f32.gmra.mrb[0].mxu0 %v1054
        %v1488 = vpop.f32.mrb[0].mxu0
        %v1489 = vadd.f32 %v1022, %v1488
        %v1490 = vpop.f32.mrb[0].mxu0
        %v1491 = vadd.f32 %v1022, %v1490
        %1492 = vmatprep.mubr.f32.mxu0 0.0
        %1493 = vmatmul.mubr.f32.gmra.mrb[0].mxu0 %v1057
        %v1494 = vpop.f32.mrb[0].mxu0
        %v1495 = vadd.f32 %v1027, %v1494
        %v1496 = vpop.f32.mrb[0].mxu0
        %v1497 = vadd.f32 %v1027, %v1496
        %1498 = vmatprep.mubr.f32.mxu0 0.0
        %1499 = vmatmul.mubr.f32.gmra.mrb[0].mxu0 %v1060
        %v1500 = vpop.f32.mrb[0].mxu0
        %v1501 = vadd.f32 %v1032, %v1500
        %v1502 = vpop.f32.mrb[0].mxu0
        %v1503 = vadd.f32 %v1032, %v1502
        %1504 = vmatprep.mubr.f32.mxu0 0.0
        %1505 = vmatmul.mubr.f32.gmra.mrb[0].mxu0 %v1063
        %v1506 = vpop.f32.mrb[0].mxu0
        %v1507 = vadd.f32 %v1037, %v1506
        %v1508 = vpop.f32.mrb[0].mxu0
        %v1509 = vadd.f32 %v1037, %v1508
        %1510 = vmatprep.mubr.f32.mxu0 0.0
        %1511 = vmatmul.mubr.f32.gmra.mrb[0].mxu0 %v1066
        %v1512 = vpop.f32.mrb[0].mxu0
        %v1513 = vadd.f32 %v1042, %v1512
        %v1514 = vpop.f32.mrb[0].mxu0
        %v1515 = vadd.f32 %v1042, %v1514
        %1516 = vmatprep.mubr.f32.mxu0 0.0
        %1517 = vmatmul.mubr.f32.gmra.mrb[0].mxu0 %v1069
        %v1518 = vpop.f32.mrb[0].mxu0
        %v1519 = vadd.f32 %v1047, %v1518
        %v1520 = vpop.f32.mrb[0].mxu0
        %v1521 = vadd.f32 %v1047, %v1520
        %1522 = vdwg.mxu0
        %v1523 = vtanh.pop %v1162
        %v1524 = vtanh.pop %v1164
        %v1525 = vtanh.pop %v1269
        %v1526 = vtanh.pop %v1271
        %v1527 = vtanh.pop %v1376
        %v1528 = vtanh.pop %v1378
        %v1529 = vtanh.pop %v1483
        %v1530 = vtanh.pop %v1485
        %v1531 = vtanh.pop %v1168
        %v1532 = vtanh.pop %v1170
        %v1533 = vtanh.pop %v1275
        %v1534 = vtanh.pop %v1277
        %v1535 = vtanh.pop %v1382
        %v1536 = vtanh.pop %v1384
        %v1537 = vtanh.pop %v1489
        %v1538 = vtanh.pop %v1491
        %v1539 = vtanh.pop %v1174
        %v1540 = vtanh.pop %v1176
        %v1541 = vtanh.pop %v1281
        %v1542 = vtanh.pop %v1283
        %v1543 = vtanh.pop %v1388
        %v1544 = vtanh.pop %v1390
        %v1545 = vtanh.pop %v1495
        %v1546 = vtanh.pop %v1497
        %v1547 = vtanh.pop %v1180
        %v1548 = vtanh.pop %v1182
        %v1549 = vtanh.pop %v1287
        %v1550 = vtanh.pop %v1289
        %v1551 = vtanh.pop %v1394
        %v1552 = vtanh.pop %v1396
        %v1553 = vtanh.pop %v1501
        %v1554 = vtanh.pop %v1503
        %v1555 = vtanh.pop %v1186
        %v1556 = vtanh.pop %v1188
        %v1557 = vtanh.pop %v1293
        %v1558 = vtanh.pop %v1295
        %v1559 = vtanh.pop %v1400
        %v1560 = vtanh.pop %v1402
        %v1561 = vtanh.pop %v1507
        %v1562 = vtanh.pop %v1509
        %v1563 = vtanh.pop %v1192
        %v1564 = vtanh.pop %v1194
        %v1565 = vtanh.pop %v1299
        %v1566 = vtanh.pop %v1301
        %v1567 = vtanh.pop %v1406
        %v1568 = vtanh.pop %v1408
        %v1569 = vtanh.pop %v1513
        %v1570 = vtanh.pop %v1515
        %v1571 = vtanh.pop %v1198
        %v1572 = vtanh.pop %v1200
        %v1573 = vtanh.pop %v1305
        %v1574 = vtanh.pop %v1307
        %v1575 = vtanh.pop %v1412
        %v1576 = vtanh.pop %v1414
        %v1577 = vtanh.pop %v1519
        %v1578 = vtanh.pop %v1521
        %v1579 = vld [vmem:[%s5] sm:$0xff]
        %v1580 = vld [vmem:[%s5 + $0x8] sm:$0xff]
        %v1581 = vld [vmem:[%s5 + $0x10] sm:$0xff]
        %v1582 = vld [vmem:[%s5 + $0x18] sm:$0xff]
        %v1583 = vld [vmem:[%s5 + $0x20] sm:$0xff]
        %v1584 = vld [vmem:[%s5 + $0x28] sm:$0xff]
        %v1585 = vld [vmem:[%s5 + $0x30] sm:$0x3]
        %v1586 = vld [vmem:[%s6] sm:$0xff]
        %v1587 = vld [vmem:[%s6 + $0x8] sm:$0xff]
        %v1588 = vld [vmem:[%s6 + $0x10] sm:$0xff]
        %v1589 = vld [vmem:[%s6 + $0x18] sm:$0xff]
        %v1590 = vld [vmem:[%s6 + $0x20] sm:$0xff]
        %v1591 = vld [vmem:[%s6 + $0x28] sm:$0xff]
        %v1592 = vld [vmem:[%s6 + $0x30] sm:$0x3]
        %1594 = vset.pattern.permute.xlu0 0
        %1595 = vperm.xlu0 %1594, %v1586
        %v1596 = vpop.permute.xlu0 %1595
        %1599 = vset.pattern.permute.xlu0 0
        %1600 = vperm.xlu0 %1599, %v1587
        %v1601 = vpop.permute.xlu0 %1600
        %1604 = vset.pattern.permute.xlu0 0
        %1605 = vperm.xlu0 %1604, %v1588
        %v1606 = vpop.permute.xlu0 %1605
        %1609 = vset.pattern.permute.xlu0 0
        %1610 = vperm.xlu0 %1609, %v1589
        %v1611 = vpop.permute.xlu0 %1610
        %1614 = vset.pattern.permute.xlu0 0
        %1615 = vperm.xlu0 %1614, %v1590
        %v1616 = vpop.permute.xlu0 %1615
        %1619 = vset.pattern.permute.xlu0 0
        %1620 = vperm.xlu0 %1619, %v1591
        %v1621 = vpop.permute.xlu0 %1620
        %1624 = vset.pattern.permute.xlu0 0
        %1625 = vperm.xlu0 %1624, %v1592
        %v1626 = vpop.permute.xlu0 %1625
        %v1629 = vsel %vm1049, %v1579, 0
        %v1632 = vsel %vm1049, %v1580, 0
        %v1635 = vsel %vm1049, %v1581, 0
        %v1638 = vsel %vm1049, %v1582, 0
        %v1641 = vsel %vm1049, %v1583, 0
        %v1644 = vsel %vm1049, %v1584, 0
        %v1647 = vsel %vm1049, %v1585, 0
        %v1650 = vsel %vm499, %v1571, 0
        %v1653 = vsel %vm499, %v1572, 0
        %v1656 = vsel %vm499, %v1573, 0
        %v1659 = vsel %vm499, %v1574, 0
        %v1662 = vsel %vm499, %v1575, 0
        %v1665 = vsel %vm499, %v1576, 0
        %v1668 = vsel %vm499, %v1577, 0
        %v1671 = vsel %vm499, %v1578, 0
        %1673 = vmatprep.subr.mxu0 %v1524
        %1674 = vmatpush1.msra.mxu0 %v1523
        %1675 = vmatprep.subr.mxu0 %v1532
        %1676 = vmatpush1.msra.mxu0 %v1531
        %1677 = vmatprep.subr.mxu0 %v1540
        %1678 = vmatpush1.msra.mxu0 %v1539
        %1679 = vmatprep.subr.mxu0 %v1548
        %1680 = vmatpush1.msra.mxu0 %v1547
        %1681 = vmatprep.subr.mxu0 %v1556
        %1682 = vmatpush1.msra.mxu0 %v1555
        %1683 = vmatprep.subr.mxu0 %v1564
        %1684 = vmatpush1.msra.mxu0 %v1563
        %1685 = vmatprep.subr.mxu0 %v1653
        %1686 = vmatpush1.msra.mxu0 %v1650
        %1687 = vmatprep.subr.mxu0 0.0
        %1688 = vmatpush1.msra.mxu0 0.0
        %1689 = vmatprep.subr.mxu0 0.0
        %1690 = vmatpush1.msra.mxu0 0.0
        %1691 = vmatprep.subr.mxu0 0.0
        %1692 = vmatpush1.msra.mxu0 0.0
        %1693 = vmatprep.subr.mxu0 0.0
        %1694 = vmatpush1.msra.mxu0 0.0
        %1695 = vmatprep.subr.mxu0 0.0
        %1696 = vmatpush1.msra.mxu0 0.0
        %1697 = vmatprep.subr.mxu0 0.0
        %1698 = vmatpush1.msra.mxu0 0.0
        %1699 = vmatprep.subr.mxu0 0.0
        %1700 = vmatpush1.msra.mxu0 0.0
        %1701 = vmatprep.subr.mxu0 0.0
        %1702 = vmatpush1.msra.mxu0 0.0
        %1703 = vmatprep.subr.mxu0 0.0
        %1704 = vmatpush1.msra.mxu0 0.0
        %1705 = vmatprep.subr.mxu0 0.0
        %1706 = vmatpush1.msra.mxu0 0.0
        %1707 = vmatprep.subr.mxu0 0.0
        %1708 = vmatpush1.msra.mxu0 0.0
        %1709 = vmatprep.subr.mxu0 0.0
        %1710 = vmatpush1.msra.mxu0 0.0
        %1711 = vmatprep.subr.mxu0 0.0
        %1712 = vmatpush1.msra.mxu0 0.0
        %1713 = vmatprep.subr.mxu0 0.0
        %1714 = vmatpush1.msra.mxu0 0.0
        %1715 = vmatprep.subr.mxu0 0.0
        %1716 = vmatpush1.msra.mxu0 0.0
        %1717 = vmatprep.subr.mxu0 0.0
        %1718 = vmatpush1.msra.mxu0 0.0
        %1719 = vmatprep.subr.mxu0 0.0
        %1720 = vmatpush1.msra.mxu0 0.0
        %1721 = vmatprep.subr.mxu0 0.0
        %1722 = vmatpush1.msra.mxu0 0.0
        %1723 = vmatprep.subr.mxu0 0.0
        %1724 = vmatpush1.msra.mxu0 0.0
        %1725 = vmatprep.subr.mxu0 0.0
        %1726 = vmatpush1.msra.mxu0 0.0
        %1727 = vmatprep.subr.mxu0 0.0
        %1728 = vmatpush1.msra.mxu0 0.0
        %1729 = vmatprep.subr.mxu0 0.0
        %1730 = vmatpush1.msra.mxu0 0.0
        %1731 = vmatprep.subr.mxu0 0.0
        %1732 = vmatpush1.msra.mxu0 0.0
        %1733 = vmatprep.subr.mxu0 0.0
        %1734 = vmatpush1.msra.mxu0 0.0
        %1735 = vmatprep.subr.mxu0 0.0
        %1736 = vmatpush1.msra.mxu0 0.0
        %1737 = vmatprep.mubr.f32.mxu0 0.0
        %1738 = vmatmul.mubr.f32.gmra.mrb[0].mxu0 %v1629
        %v1739 = vpop.f32.mrb[0].mxu0
        %v1740 = vadd.f32 %v1596, %v1739
        %v1741 = vpop.f32.mrb[0].mxu0
        %v1742 = vadd.f32 %v1596, %v1741
        %1743 = vmatprep.mubr.f32.mxu0 0.0
        %1744 = vmatmul.mubr.f32.gmra.mrb[0].mxu0 %v1632
        %v1745 = vpop.f32.mrb[0].mxu0
        %v1746 = vadd.f32 %v1601, %v1745
        %v1747 = vpop.f32.mrb[0].mxu0
        %v1748 = vadd.f32 %v1601, %v1747
        %1749 = vmatprep.mubr.f32.mxu0 0.0
        %1750 = vmatmul.mubr.f32.gmra.mrb[0].mxu0 %v1635
        %v1751 = vpop.f32.mrb[0].mxu0
        %v1752 = vadd.f32 %v1606, %v1751
        %v1753 = vpop.f32.mrb[0].mxu0
        %v1754 = vadd.f32 %v1606, %v1753
        %1755 = vmatprep.mubr.f32.mxu0 0.0
        %1756 = vmatmul.mubr.f32.gmra.mrb[0].mxu0 %v1638
        %v1757 = vpop.f32.mrb[0].mxu0
        %v1758 = vadd.f32 %v1611, %v1757
        %v1759 = vpop.f32.mrb[0].mxu0
        %v1760 = vadd.f32 %v1611, %v1759
        %1761 = vmatprep.mubr.f32.mxu0 0.0
        %1762 = vmatmul.mubr.f32.gmra.mrb[0].mxu0 %v1641
        %v1763 = vpop.f32.mrb[0].mxu0
        %v1764 = vadd.f32 %v1616, %v1763
        %v1765 = vpop.f32.mrb[0].mxu0
        %v1766 = vadd.f32 %v1616, %v1765
        %1767 = vmatprep.mubr.f32.mxu0 0.0
        %1768 = vmatmul.mubr.f32.gmra.mrb[0].mxu0 %v1644
        %v1769 = vpop.f32.mrb[0].mxu0
        %v1770 = vadd.f32 %v1621, %v1769
        %v1771 = vpop.f32.mrb[0].mxu0
        %v1772 = vadd.f32 %v1621, %v1771
        %1773 = vmatprep.mubr.f32.mxu0 0.0
        %1774 = vmatmul.mubr.f32.gmra.mrb[0].mxu0 %v1647
        %v1775 = vpop.f32.mrb[0].mxu0
        %v1776 = vadd.f32 %v1626, %v1775
        %v1777 = vpop.f32.mrb[0].mxu0
        %v1778 = vadd.f32 %v1626, %v1777
        %1779 = vdwg.mxu0
        %1780 = vmatprep.subr.mxu0 %v1526
        %1781 = vmatpush1.msra.mxu0 %v1525
        %1782 = vmatprep.subr.mxu0 %v1534
        %1783 = vmatpush1.msra.mxu0 %v1533
        %1784 = vmatprep.subr.mxu0 %v1542
        %1785 = vmatpush1.msra.mxu0 %v1541
        %1786 = vmatprep.subr.mxu0 %v1550
        %1787 = vmatpush1.msra.mxu0 %v1549
        %1788 = vmatprep.subr.mxu0 %v1558
        %1789 = vmatpush1.msra.mxu0 %v1557
        %1790 = vmatprep.subr.mxu0 %v1566
        %1791 = vmatpush1.msra.mxu0 %v1565
        %1792 = vmatprep.subr.mxu0 %v1659
        %1793 = vmatpush1.msra.mxu0 %v1656
        %1794 = vmatprep.subr.mxu0 0.0
        %1795 = vmatpush1.msra.mxu0 0.0
        %1796 = vmatprep.subr.mxu0 0.0
        %1797 = vmatpush1.msra.mxu0 0.0
        %1798 = vmatprep.subr.mxu0 0.0
        %1799 = vmatpush1.msra.mxu0 0.0
        %1800 = vmatprep.subr.mxu0 0.0
        %1801 = vmatpush1.msra.mxu0 0.0
        %1802 = vmatprep.subr.mxu0 0.0
        %1803 = vmatpush1.msra.mxu0 0.0
        %1804 = vmatprep.subr.mxu0 0.0
        %1805 = vmatpush1.msra.mxu0 0.0
        %1806 = vmatprep.subr.mxu0 0.0
        %1807 = vmatpush1.msra.mxu0 0.0
        %1808 = vmatprep.subr.mxu0 0.0
        %1809 = vmatpush1.msra.mxu0 0.0
        %1810 = vmatprep.subr.mxu0 0.0
        %1811 = vmatpush1.msra.mxu0 0.0
        %1812 = vmatprep.subr.mxu0 0.0
        %1813 = vmatpush1.msra.mxu0 0.0
        %1814 = vmatprep.subr.mxu0 0.0
        %1815 = vmatpush1.msra.mxu0 0.0
        %1816 = vmatprep.subr.mxu0 0.0
        %1817 = vmatpush1.msra.mxu0 0.0
        %1818 = vmatprep.subr.mxu0 0.0
        %1819 = vmatpush1.msra.mxu0 0.0
        %1820 = vmatprep.subr.mxu0 0.0
        %1821 = vmatpush1.msra.mxu0 0.0
        %1822 = vmatprep.subr.mxu0 0.0
        %1823 = vmatpush1.msra.mxu0 0.0
        %1824 = vmatprep.subr.mxu0 0.0
        %1825 = vmatpush1.msra.mxu0 0.0
        %1826 = vmatprep.subr.mxu0 0.0
        %1827 = vmatpush1.msra.mxu0 0.0
        %1828 = vmatprep.subr.mxu0 0.0
        %1829 = vmatpush1.msra.mxu0 0.0
        %1830 = vmatprep.subr.mxu0 0.0
        %1831 = vmatpush1.msra.mxu0 0.0
        %1832 = vmatprep.subr.mxu0 0.0
        %1833 = vmatpush1.msra.mxu0 0.0
        %1834 = vmatprep.subr.mxu0 0.0
        %1835 = vmatpush1.msra.mxu0 0.0
        %1836 = vmatprep.subr.mxu0 0.0
        %1837 = vmatpush1.msra.mxu0 0.0
        %1838 = vmatprep.subr.mxu0 0.0
        %1839 = vmatpush1.msra.mxu0 0.0
        %1840 = vmatprep.subr.mxu0 0.0
        %1841 = vmatpush1.msra.mxu0 0.0
        %1842 = vmatprep.subr.mxu0 0.0
        %1843 = vmatpush1.msra.mxu0 0.0
        %1844 = vmatprep.mubr.f32.mxu0 0.0
        %1845 = vmatmul.mubr.f32.gmra.mrb[0].mxu0 %v1629
        %v1846 = vpop.f32.mrb[0].mxu0
        %v1847 = vadd.f32 %v1596, %v1846
        %v1848 = vpop.f32.mrb[0].mxu0
        %v1849 = vadd.f32 %v1596, %v1848
        %1850 = vmatprep.mubr.f32.mxu0 0.0
        %1851 = vmatmul.mubr.f32.gmra.mrb[0].mxu0 %v1632
        %v1852 = vpop.f32.mrb[0].mxu0
        %v1853 = vadd.f32 %v1601, %v1852
        %v1854 = vpop.f32.mrb[0].mxu0
        %v1855 = vadd.f32 %v1601, %v1854
        %1856 = vmatprep.mubr.f32.mxu0 0.0
        %1857 = vmatmul.mubr.f32.gmra.mrb[0].mxu0 %v1635
        %v1858 = vpop.f32.mrb[0].mxu0
        %v1859 = vadd.f32 %v1606, %v1858
        %v1860 = vpop.f32.mrb[0].mxu0
        %v1861 = vadd.f32 %v1606, %v1860
        %1862 = vmatprep.mubr.f32.mxu0 0.0
        %1863 = vmatmul.mubr.f32.gmra.mrb[0].mxu0 %v1638
        %v1864 = vpop.f32.mrb[0].mxu0
        %v1865 = vadd.f32 %v1611, %v1864
        %v1866 = vpop.f32.mrb[0].mxu0
        %v1867 = vadd.f32 %v1611, %v1866
        %1868 = vmatprep.mubr.f32.mxu0 0.0
        %1869 = vmatmul.mubr.f32.gmra.mrb[0].mxu0 %v1641
        %v1870 = vpop.f32.mrb[0].mxu0
        %v1871 = vadd.f32 %v1616, %v1870
        %v1872 = vpop.f32.mrb[0].mxu0
        %v1873 = vadd.f32 %v1616, %v1872
        %1874 = vmatprep.mubr.f32.mxu0 0.0
        %1875 = vmatmul.mubr.f32.gmra.mrb[0].mxu0 %v1644
        %v1876 = vpop.f32.mrb[0].mxu0
        %v1877 = vadd.f32 %v1621, %v1876
        %v1878 = vpop.f32.mrb[0].mxu0
        %v1879 = vadd.f32 %v1621, %v1878
        %1880 = vmatprep.mubr.f32.mxu0 0.0
        %1881 = vmatmul.mubr.f32.gmra.mrb[0].mxu0 %v1647
        %v1882 = vpop.f32.mrb[0].mxu0
        %v1883 = vadd.f32 %v1626, %v1882
        %v1884 = vpop.f32.mrb[0].mxu0
        %v1885 = vadd.f32 %v1626, %v1884
        %1886 = vdwg.mxu0
        %1887 = vmatprep.subr.mxu0 %v1528
        %1888 = vmatpush1.msra.mxu0 %v1527
        %1889 = vmatprep.subr.mxu0 %v1536
        %1890 = vmatpush1.msra.mxu0 %v1535
        %1891 = vmatprep.subr.mxu0 %v1544
        %1892 = vmatpush1.msra.mxu0 %v1543
        %1893 = vmatprep.subr.mxu0 %v1552
        %1894 = vmatpush1.msra.mxu0 %v1551
        %1895 = vmatprep.subr.mxu0 %v1560
        %1896 = vmatpush1.msra.mxu0 %v1559
        %1897 = vmatprep.subr.mxu0 %v1568
        %1898 = vmatpush1.msra.mxu0 %v1567
        %1899 = vmatprep.subr.mxu0 %v1665
        %1900 = vmatpush1.msra.mxu0 %v1662
        %1901 = vmatprep.subr.mxu0 0.0
        %1902 = vmatpush1.msra.mxu0 0.0
        %1903 = vmatprep.subr.mxu0 0.0
        %1904 = vmatpush1.msra.mxu0 0.0
        %1905 = vmatprep.subr.mxu0 0.0
        %1906 = vmatpush1.msra.mxu0 0.0
        %1907 = vmatprep.subr.mxu0 0.0
        %1908 = vmatpush1.msra.mxu0 0.0
        %1909 = vmatprep.subr.mxu0 0.0
        %1910 = vmatpush1.msra.mxu0 0.0
        %1911 = vmatprep.subr.mxu0 0.0
        %1912 = vmatpush1.msra.mxu0 0.0
        %1913 = vmatprep.subr.mxu0 0.0
        %1914 = vmatpush1.msra.mxu0 0.0
        %1915 = vmatprep.subr.mxu0 0.0
        %1916 = vmatpush1.msra.mxu0 0.0
        %1917 = vmatprep.subr.mxu0 0.0
        %1918 = vmatpush1.msra.mxu0 0.0
        %1919 = vmatprep.subr.mxu0 0.0
        %1920 = vmatpush1.msra.mxu0 0.0
        %1921 = vmatprep.subr.mxu0 0.0
        %1922 = vmatpush1.msra.mxu0 0.0
        %1923 = vmatprep.subr.mxu0 0.0
        %1924 = vmatpush1.msra.mxu0 0.0
        %1925 = vmatprep.subr.mxu0 0.0
        %1926 = vmatpush1.msra.mxu0 0.0
        %1927 = vmatprep.subr.mxu0 0.0
        %1928 = vmatpush1.msra.mxu0 0.0
        %1929 = vmatprep.subr.mxu0 0.0
        %1930 = vmatpush1.msra.mxu0 0.0
        %1931 = vmatprep.subr.mxu0 0.0
        %1932 = vmatpush1.msra.mxu0 0.0
        %1933 = vmatprep.subr.mxu0 0.0
        %1934 = vmatpush1.msra.mxu0 0.0
        %1935 = vmatprep.subr.mxu0 0.0
        %1936 = vmatpush1.msra.mxu0 0.0
        %1937 = vmatprep.subr.mxu0 0.0
        %1938 = vmatpush1.msra.mxu0 0.0
        %1939 = vmatprep.subr.mxu0 0.0
        %1940 = vmatpush1.msra.mxu0 0.0
        %1941 = vmatprep.subr.mxu0 0.0
        %1942 = vmatpush1.msra.mxu0 0.0
        %1943 = vmatprep.subr.mxu0 0.0
        %1944 = vmatpush1.msra.mxu0 0.0
        %1945 = vmatprep.subr.mxu0 0.0
        %1946 = vmatpush1.msra.mxu0 0.0
        %1947 = vmatprep.subr.mxu0 0.0
        %1948 = vmatpush1.msra.mxu0 0.0
        %1949 = vmatprep.subr.mxu0 0.0
        %1950 = vmatpush1.msra.mxu0 0.0
        %1951 = vmatprep.mubr.f32.mxu0 0.0
        %1952 = vmatmul.mubr.f32.gmra.mrb[0].mxu0 %v1629
        %v1953 = vpop.f32.mrb[0].mxu0
        %v1954 = vadd.f32 %v1596, %v1953
        %v1955 = vpop.f32.mrb[0].mxu0
        %v1956 = vadd.f32 %v1596, %v1955
        %1957 = vmatprep.mubr.f32.mxu0 0.0
        %1958 = vmatmul.mubr.f32.gmra.mrb[0].mxu0 %v1632
        %v1959 = vpop.f32.mrb[0].mxu0
        %v1960 = vadd.f32 %v1601, %v1959
        %v1961 = vpop.f32.mrb[0].mxu0
        %v1962 = vadd.f32 %v1601, %v1961
        %1963 = vmatprep.mubr.f32.mxu0 0.0
        %1964 = vmatmul.mubr.f32.gmra.mrb[0].mxu0 %v1635
        %v1965 = vpop.f32.mrb[0].mxu0
        %v1966 = vadd.f32 %v1606, %v1965
        %v1967 = vpop.f32.mrb[0].mxu0
        %v1968 = vadd.f32 %v1606, %v1967
        %1969 = vmatprep.mubr.f32.mxu0 0.0
        %1970 = vmatmul.mubr.f32.gmra.mrb[0].mxu0 %v1638
        %v1971 = vpop.f32.mrb[0].mxu0
        %v1972 = vadd.f32 %v1611, %v1971
        %v1973 = vpop.f32.mrb[0].mxu0
        %v1974 = vadd.f32 %v1611, %v1973
        %1975 = vmatprep.mubr.f32.mxu0 0.0
        %1976 = vmatmul.mubr.f32.gmra.mrb[0].mxu0 %v1641
        %v1977 = vpop.f32.mrb[0].mxu0
        %v1978 = vadd.f32 %v1616, %v1977
        %v1979 = vpop.f32.mrb[0].mxu0
        %v1980 = vadd.f32 %v1616, %v1979
        %1981 = vmatprep.mubr.f32.mxu0 0.0
        %1982 = vmatmul.mubr.f32.gmra.mrb[0].mxu0 %v1644
        %v1983 = vpop.f32.mrb[0].mxu0
        %v1984 = vadd.f32 %v1621, %v1983
        %v1985 = vpop.f32.mrb[0].mxu0
        %v1986 = vadd.f32 %v1621, %v1985
        %1987 = vmatprep.mubr.f32.mxu0 0.0
        %1988 = vmatmul.mubr.f32.gmra.mrb[0].mxu0 %v1647
        %v1989 = vpop.f32.mrb[0].mxu0
        %v1990 = vadd.f32 %v1626, %v1989
        %v1991 = vpop.f32.mrb[0].mxu0
        %v1992 = vadd.f32 %v1626, %v1991
        %1993 = vdwg.mxu0
        %1994 = vmatprep.subr.mxu0 %v1530
        %1995 = vmatpush1.msra.mxu0 %v1529
        %1996 = vmatprep.subr.mxu0 %v1538
        %1997 = vmatpush1.msra.mxu0 %v1537
        %1998 = vmatprep.subr.mxu0 %v1546
        %1999 = vmatpush1.msra.mxu0 %v1545
        %2000 = vmatprep.subr.mxu0 %v1554
        %2001 = vmatpush1.msra.mxu0 %v1553
        %2002 = vmatprep.subr.mxu0 %v1562
        %2003 = vmatpush1.msra.mxu0 %v1561
        %2004 = vmatprep.subr.mxu0 %v1570
        %2005 = vmatpush1.msra.mxu0 %v1569
        %2006 = vmatprep.subr.mxu0 %v1671
        %2007 = vmatpush1.msra.mxu0 %v1668
        %2008 = vmatprep.subr.mxu0 0.0
        %2009 = vmatpush1.msra.mxu0 0.0
        %2010 = vmatprep.subr.mxu0 0.0
        %2011 = vmatpush1.msra.mxu0 0.0
        %2012 = vmatprep.subr.mxu0 0.0
        %2013 = vmatpush1.msra.mxu0 0.0
        %2014 = vmatprep.subr.mxu0 0.0
        %2015 = vmatpush1.msra.mxu0 0.0
        %2016 = vmatprep.subr.mxu0 0.0
        %2017 = vmatpush1.msra.mxu0 0.0
        %2018 = vmatprep.subr.mxu0 0.0
        %2019 = vmatpush1.msra.mxu0 0.0
        %2020 = vmatprep.subr.mxu0 0.0
        %2021 = vmatpush1.msra.mxu0 0.0
        %2022 = vmatprep.subr.mxu0 0.0
        %2023 = vmatpush1.msra.mxu0 0.0
        %2024 = vmatprep.subr.mxu0 0.0
        %2025 = vmatpush1.msra.mxu0 0.0
        %2026 = vmatprep.subr.mxu0 0.0
        %2027 = vmatpush1.msra.mxu0 0.0
        %2028 = vmatprep.subr.mxu0 0.0
        %2029 = vmatpush1.msra.mxu0 0.0
        %2030 = vmatprep.subr.mxu0 0.0
        %2031 = vmatpush1.msra.mxu0 0.0
        %2032 = vmatprep.subr.mxu0 0.0
        %2033 = vmatpush1.msra.mxu0 0.0
        %2034 = vmatprep.subr.mxu0 0.0
        %2035 = vmatpush1.msra.mxu0 0.0
        %2036 = vmatprep.subr.mxu0 0.0
        %2037 = vmatpush1.msra.mxu0 0.0
        %2038 = vmatprep.subr.mxu0 0.0
        %2039 = vmatpush1.msra.mxu0 0.0
        %2040 = vmatprep.subr.mxu0 0.0
        %2041 = vmatpush1.msra.mxu0 0.0
        %2042 = vmatprep.subr.mxu0 0.0
        %2043 = vmatpush1.msra.mxu0 0.0
        %2044 = vmatprep.subr.mxu0 0.0
        %2045 = vmatpush1.msra.mxu0 0.0
        %2046 = vmatprep.subr.mxu0 0.0
        %2047 = vmatpush1.msra.mxu0 0.0
        %2048 = vmatprep.subr.mxu0 0.0
        %2049 = vmatpush1.msra.mxu0 0.0
        %2050 = vmatprep.subr.mxu0 0.0
        %2051 = vmatpush1.msra.mxu0 0.0
        %2052 = vmatprep.subr.mxu0 0.0
        %2053 = vmatpush1.msra.mxu0 0.0
        %2054 = vmatprep.subr.mxu0 0.0
        %2055 = vmatpush1.msra.mxu0 0.0
        %2056 = vmatprep.subr.mxu0 0.0
        %2057 = vmatpush1.msra.mxu0 0.0
        %2058 = vmatprep.mubr.f32.mxu0 0.0
        %2059 = vmatmul.mubr.f32.gmra.mrb[0].mxu0 %v1629
        %v2060 = vpop.f32.mrb[0].mxu0
        %v2061 = vadd.f32 %v1596, %v2060
        %v2062 = vpop.f32.mrb[0].mxu0
        %v2063 = vadd.f32 %v1596, %v2062
        %2064 = vmatprep.mubr.f32.mxu0 0.0
        %2065 = vmatmul.mubr.f32.gmra.mrb[0].mxu0 %v1632
        %v2066 = vpop.f32.mrb[0].mxu0
        %v2067 = vadd.f32 %v1601, %v2066
        %v2068 = vpop.f32.mrb[0].mxu0
        %v2069 = vadd.f32 %v1601, %v2068
        %2070 = vmatprep.mubr.f32.mxu0 0.0
        %2071 = vmatmul.mubr.f32.gmra.mrb[0].mxu0 %v1635
        %v2072 = vpop.f32.mrb[0].mxu0
        %v2073 = vadd.f32 %v1606, %v2072
        %v2074 = vpop.f32.mrb[0].mxu0
        %v2075 = vadd.f32 %v1606, %v2074
        %2076 = vmatprep.mubr.f32.mxu0 0.0
        %2077 = vmatmul.mubr.f32.gmra.mrb[0].mxu0 %v1638
        %v2078 = vpop.f32.mrb[0].mxu0
        %v2079 = vadd.f32 %v1611, %v2078
        %v2080 = vpop.f32.mrb[0].mxu0
        %v2081 = vadd.f32 %v1611, %v2080
        %2082 = vmatprep.mubr.f32.mxu0 0.0
        %2083 = vmatmul.mubr.f32.gmra.mrb[0].mxu0 %v1641
        %v2084 = vpop.f32.mrb[0].mxu0
        %v2085 = vadd.f32 %v1616, %v2084
        %v2086 = vpop.f32.mrb[0].mxu0
        %v2087 = vadd.f32 %v1616, %v2086
        %2088 = vmatprep.mubr.f32.mxu0 0.0
        %2089 = vmatmul.mubr.f32.gmra.mrb[0].mxu0 %v1644
        %v2090 = vpop.f32.mrb[0].mxu0
        %v2091 = vadd.f32 %v1621, %v2090
        %v2092 = vpop.f32.mrb[0].mxu0
        %v2093 = vadd.f32 %v1621, %v2092
        %2094 = vmatprep.mubr.f32.mxu0 0.0
        %2095 = vmatmul.mubr.f32.gmra.mrb[0].mxu0 %v1647
        %v2096 = vpop.f32.mrb[0].mxu0
        %v2097 = vadd.f32 %v1626, %v2096
        %v2098 = vpop.f32.mrb[0].mxu0
        %v2099 = vadd.f32 %v1626, %v2098
        %2100 = vdwg.mxu0
        %v2101 = vtanh.pop %v1740
        %v2102 = vtanh.pop %v1742
        %v2103 = vtanh.pop %v1847
        %v2104 = vtanh.pop %v1849
        %v2105 = vtanh.pop %v1954
        %v2106 = vtanh.pop %v1956
        %v2107 = vtanh.pop %v2061
        %v2108 = vtanh.pop %v2063
        %v2109 = vtanh.pop %v1746
        %v2110 = vtanh.pop %v1748
        %v2111 = vtanh.pop %v1853
        %v2112 = vtanh.pop %v1855
        %v2113 = vtanh.pop %v1960
        %v2114 = vtanh.pop %v1962
        %v2115 = vtanh.pop %v2067
        %v2116 = vtanh.pop %v2069
        %v2117 = vtanh.pop %v1752
        %v2118 = vtanh.pop %v1754
        %v2119 = vtanh.pop %v1859
        %v2120 = vtanh.pop %v1861
        %v2121 = vtanh.pop %v1966
        %v2122 = vtanh.pop %v1968
        %v2123 = vtanh.pop %v2073
        %v2124 = vtanh.pop %v2075
        %v2125 = vtanh.pop %v1758
        %v2126 = vtanh.pop %v1760
        %v2127 = vtanh.pop %v1865
        %v2128 = vtanh.pop %v1867
        %v2129 = vtanh.pop %v1972
        %v2130 = vtanh.pop %v1974
        %v2131 = vtanh.pop %v2079
        %v2132 = vtanh.pop %v2081
        %v2133 = vtanh.pop %v1764
        %v2134 = vtanh.pop %v1766
        %v2135 = vtanh.pop %v1871
        %v2136 = vtanh.pop %v1873
        %v2137 = vtanh.pop %v1978
        %v2138 = vtanh.pop %v1980
        %v2139 = vtanh.pop %v2085
        %v2140 = vtanh.pop %v2087
        %v2141 = vtanh.pop %v1770
        %v2142 = vtanh.pop %v1772
        %v2143 = vtanh.pop %v1877
        %v2144 = vtanh.pop %v1879
        %v2145 = vtanh.pop %v1984
        %v2146 = vtanh.pop %v1986
        %v2147 = vtanh.pop %v2091
        %v2148 = vtanh.pop %v2093
        %v2149 = vtanh.pop %v1776
        %v2150 = vtanh.pop %v1778
        %v2151 = vtanh.pop %v1883
        %v2152 = vtanh.pop %v1885
        %v2153 = vtanh.pop %v1990
        %v2154 = vtanh.pop %v1992
        %v2155 = vtanh.pop %v2097
        %v2156 = vtanh.pop %v2099
        %v2157 = vld [vmem:[%s7] sm:$0xff]
        %v2158 = vld [vmem:[%s7 + $0x8] sm:$0xff]
        %v2159 = vld [vmem:[%s7 + $0x10] sm:$0xff]
        %v2160 = vld [vmem:[%s7 + $0x18] sm:$0xff]
        %v2161 = vld [vmem:[%s7 + $0x20] sm:$0xff]
        %v2162 = vld [vmem:[%s7 + $0x28] sm:$0xff]
        %v2163 = vld [vmem:[%s7 + $0x30] sm:$0x3]
        %v2164 = vld [vmem:[%s8] sm:$0xff]
        %v2165 = vld [vmem:[%s8 + $0x8] sm:$0xff]
        %v2166 = vld [vmem:[%s8 + $0x10] sm:$0xff]
        %v2167 = vld [vmem:[%s8 + $0x18] sm:$0xff]
        %v2168 = vld [vmem:[%s8 + $0x20] sm:$0xff]
        %v2169 = vld [vmem:[%s8 + $0x28] sm:$0xff]
        %v2170 = vld [vmem:[%s8 + $0x30] sm:$0x3]
        %2172 = vset.pattern.permute.xlu0 0
        %2173 = vperm.xlu0 %2172, %v2164
        %v2174 = vpop.permute.xlu0 %2173
        %2177 = vset.pattern.permute.xlu0 0
        %2178 = vperm.xlu0 %2177, %v2165
        %v2179 = vpop.permute.xlu0 %2178
        %2182 = vset.pattern.permute.xlu0 0
        %2183 = vperm.xlu0 %2182, %v2166
        %v2184 = vpop.permute.xlu0 %2183
        %2187 = vset.pattern.permute.xlu0 0
        %2188 = vperm.xlu0 %2187, %v2167
        %v2189 = vpop.permute.xlu0 %2188
        %2192 = vset.pattern.permute.xlu0 0
        %2193 = vperm.xlu0 %2192, %v2168
        %v2194 = vpop.permute.xlu0 %2193
        %2197 = vset.pattern.permute.xlu0 0
        %2198 = vperm.xlu0 %2197, %v2169
        %v2199 = vpop.permute.xlu0 %2198
        %2202 = vset.pattern.permute.xlu0 0
        %2203 = vperm.xlu0 %2202, %v2170
        %v2204 = vpop.permute.xlu0 %2203
        %v2207 = vsel %vm1049, %v2157, 0
        %v2210 = vsel %vm1049, %v2158, 0
        %v2213 = vsel %vm1049, %v2159, 0
        %v2216 = vsel %vm1049, %v2160, 0
        %v2219 = vsel %vm1049, %v2161, 0
        %v2222 = vsel %vm1049, %v2162, 0
        %v2225 = vsel %vm1049, %v2163, 0
        %v2228 = vsel %vm499, %v2149, 0
        %v2231 = vsel %vm499, %v2150, 0
        %v2234 = vsel %vm499, %v2151, 0
        %v2237 = vsel %vm499, %v2152, 0
        %v2240 = vsel %vm499, %v2153, 0
        %v2243 = vsel %vm499, %v2154, 0
        %v2246 = vsel %vm499, %v2155, 0
        %v2249 = vsel %vm499, %v2156, 0
        %2251 = vmatprep.subr.mxu0 %v2102
        %2252 = vmatpush1.msra.mxu0 %v2101
        %2253 = vmatprep.subr.mxu0 %v2110
        %2254 = vmatpush1.msra.mxu0 %v2109
        %2255 = vmatprep.subr.mxu0 %v2118
        %2256 = vmatpush1.msra.mxu0 %v2117
        %2257 = vmatprep.subr.mxu0 %v2126
        %2258 = vmatpush1.msra.mxu0 %v2125
        %2259 = vmatprep.subr.mxu0 %v2134
        %2260 = vmatpush1.msra.mxu0 %v2133
        %2261 = vmatprep.subr.mxu0 %v2142
        %2262 = vmatpush1.msra.mxu0 %v2141
        %2263 = vmatprep.subr.mxu0 %v2231
        %2264 = vmatpush1.msra.mxu0 %v2228
        %2265 = vmatprep.subr.mxu0 0.0
        %2266 = vmatpush1.msra.mxu0 0.0
        %2267 = vmatprep.subr.mxu0 0.0
        %2268 = vmatpush1.msra.mxu0 0.0
        %2269 = vmatprep.subr.mxu0 0.0
        %2270 = vmatpush1.msra.mxu0 0.0
        %2271 = vmatprep.subr.mxu0 0.0
        %2272 = vmatpush1.msra.mxu0 0.0
        %2273 = vmatprep.subr.mxu0 0.0
        %2274 = vmatpush1.msra.mxu0 0.0
        %2275 = vmatprep.subr.mxu0 0.0
        %2276 = vmatpush1.msra.mxu0 0.0
        %2277 = vmatprep.subr.mxu0 0.0
        %2278 = vmatpush1.msra.mxu0 0.0
        %2279 = vmatprep.subr.mxu0 0.0
        %2280 = vmatpush1.msra.mxu0 0.0
        %2281 = vmatprep.subr.mxu0 0.0
        %2282 = vmatpush1.msra.mxu0 0.0
        %2283 = vmatprep.subr.mxu0 0.0
        %2284 = vmatpush1.msra.mxu0 0.0
        %2285 = vmatprep.subr.mxu0 0.0
        %2286 = vmatpush1.msra.mxu0 0.0
        %2287 = vmatprep.subr.mxu0 0.0
        %2288 = vmatpush1.msra.mxu0 0.0
        %2289 = vmatprep.subr.mxu0 0.0
        %2290 = vmatpush1.msra.mxu0 0.0
        %2291 = vmatprep.subr.mxu0 0.0
        %2292 = vmatpush1.msra.mxu0 0.0
        %2293 = vmatprep.subr.mxu0 0.0
        %2294 = vmatpush1.msra.mxu0 0.0
        %2295 = vmatprep.subr.mxu0 0.0
        %2296 = vmatpush1.msra.mxu0 0.0
        %2297 = vmatprep.subr.mxu0 0.0
        %2298 = vmatpush1.msra.mxu0 0.0
        %2299 = vmatprep.subr.mxu0 0.0
        %2300 = vmatpush1.msra.mxu0 0.0
        %2301 = vmatprep.subr.mxu0 0.0
        %2302 = vmatpush1.msra.mxu0 0.0
        %2303 = vmatprep.subr.mxu0 0.0
        %2304 = vmatpush1.msra.mxu0 0.0
        %2305 = vmatprep.subr.mxu0 0.0
        %2306 = vmatpush1.msra.mxu0 0.0
        %2307 = vmatprep.subr.mxu0 0.0
        %2308 = vmatpush1.msra.mxu0 0.0
        %2309 = vmatprep.subr.mxu0 0.0
        %2310 = vmatpush1.msra.mxu0 0.0
        %2311 = vmatprep.subr.mxu0 0.0
        %2312 = vmatpush1.msra.mxu0 0.0
        %2313 = vmatprep.subr.mxu0 0.0
        %2314 = vmatpush1.msra.mxu0 0.0
        %2315 = vmatprep.mubr.f32.mxu0 0.0
        %2316 = vmatmul.mubr.f32.gmra.mrb[0].mxu0 %v2207
        %v2317 = vpop.f32.mrb[0].mxu0
        %v2318 = vadd.f32 %v2174, %v2317
        %v2319 = vpop.f32.mrb[0].mxu0
        %v2320 = vadd.f32 %v2174, %v2319
        %2321 = vmatprep.mubr.f32.mxu0 0.0
        %2322 = vmatmul.mubr.f32.gmra.mrb[0].mxu0 %v2210
        %v2323 = vpop.f32.mrb[0].mxu0
        %v2324 = vadd.f32 %v2179, %v2323
        %v2325 = vpop.f32.mrb[0].mxu0
        %v2326 = vadd.f32 %v2179, %v2325
        %2327 = vmatprep.mubr.f32.mxu0 0.0
        %2328 = vmatmul.mubr.f32.gmra.mrb[0].mxu0 %v2213
        %v2329 = vpop.f32.mrb[0].mxu0
        %v2330 = vadd.f32 %v2184, %v2329
        %v2331 = vpop.f32.mrb[0].mxu0
        %v2332 = vadd.f32 %v2184, %v2331
        %2333 = vmatprep.mubr.f32.mxu0 0.0
        %2334 = vmatmul.mubr.f32.gmra.mrb[0].mxu0 %v2216
        %v2335 = vpop.f32.mrb[0].mxu0
        %v2336 = vadd.f32 %v2189, %v2335
        %v2337 = vpop.f32.mrb[0].mxu0
        %v2338 = vadd.f32 %v2189, %v2337
        %2339 = vmatprep.mubr.f32.mxu0 0.0
        %2340 = vmatmul.mubr.f32.gmra.mrb[0].mxu0 %v2219
        %v2341 = vpop.f32.mrb[0].mxu0
        %v2342 = vadd.f32 %v2194, %v2341
        %v2343 = vpop.f32.mrb[0].mxu0
        %v2344 = vadd.f32 %v2194, %v2343
        %2345 = vmatprep.mubr.f32.mxu0 0.0
        %2346 = vmatmul.mubr.f32.gmra.mrb[0].mxu0 %v2222
        %v2347 = vpop.f32.mrb[0].mxu0
        %v2348 = vadd.f32 %v2199, %v2347
        %v2349 = vpop.f32.mrb[0].mxu0
        %v2350 = vadd.f32 %v2199, %v2349
        %2351 = vmatprep.mubr.f32.mxu0 0.0
        %2352 = vmatmul.mubr.f32.gmra.mrb[0].mxu0 %v2225
        %v2353 = vpop.f32.mrb[0].mxu0
        %v2354 = vadd.f32 %v2204, %v2353
        %v2355 = vpop.f32.mrb[0].mxu0
        %v2356 = vadd.f32 %v2204, %v2355
        %2357 = vdwg.mxu0
        %2358 = vmatprep.subr.mxu0 %v2104
        %2359 = vmatpush1.msra.mxu0 %v2103
        %2360 = vmatprep.subr.mxu0 %v2112
        %2361 = vmatpush1.msra.mxu0 %v2111
        %2362 = vmatprep.subr.mxu0 %v2120
        %2363 = vmatpush1.msra.mxu0 %v2119
        %2364 = vmatprep.subr.mxu0 %v2128
        %2365 = vmatpush1.msra.mxu0 %v2127
        %2366 = vmatprep.subr.mxu0 %v2136
        %2367 = vmatpush1.msra.mxu0 %v2135
        %2368 = vmatprep.subr.mxu0 %v2144
        %2369 = vmatpush1.msra.mxu0 %v2143
        %2370 = vmatprep.subr.mxu0 %v2237
        %2371 = vmatpush1.msra.mxu0 %v2234
        %2372 = vmatprep.subr.mxu0 0.0
        %2373 = vmatpush1.msra.mxu0 0.0
        %2374 = vmatprep.subr.mxu0 0.0
        %2375 = vmatpush1.msra.mxu0 0.0
        %2376 = vmatprep.subr.mxu0 0.0
        %2377 = vmatpush1.msra.mxu0 0.0
        %2378 = vmatprep.subr.mxu0 0.0
        %2379 = vmatpush1.msra.mxu0 0.0
        %2380 = vmatprep.subr.mxu0 0.0
        %2381 = vmatpush1.msra.mxu0 0.0
        %2382 = vmatprep.subr.mxu0 0.0
        %2383 = vmatpush1.msra.mxu0 0.0
        %2384 = vmatprep.subr.mxu0 0.0
        %2385 = vmatpush1.msra.mxu0 0.0
        %2386 = vmatprep.subr.mxu0 0.0
        %2387 = vmatpush1.msra.mxu0 0.0
        %2388 = vmatprep.subr.mxu0 0.0
        %2389 = vmatpush1.msra.mxu0 0.0
        %2390 = vmatprep.subr.mxu0 0.0
        %2391 = vmatpush1.msra.mxu0 0.0
        %2392 = vmatprep.subr.mxu0 0.0
        %2393 = vmatpush1.msra.mxu0 0.0
        %2394 = vmatprep.subr.mxu0 0.0
        %2395 = vmatpush1.msra.mxu0 0.0
        %2396 = vmatprep.subr.mxu0 0.0
        %2397 = vmatpush1.msra.mxu0 0.0
        %2398 = vmatprep.subr.mxu0 0.0
        %2399 = vmatpush1.msra.mxu0 0.0
        %2400 = vmatprep.subr.mxu0 0.0
        %2401 = vmatpush1.msra.mxu0 0.0
        %2402 = vmatprep.subr.mxu0 0.0
        %2403 = vmatpush1.msra.mxu0 0.0
        %2404 = vmatprep.subr.mxu0 0.0
        %2405 = vmatpush1.msra.mxu0 0.0
        %2406 = vmatprep.subr.mxu0 0.0
        %2407 = vmatpush1.msra.mxu0 0.0
        %2408 = vmatprep.subr.mxu0 0.0
        %2409 = vmatpush1.msra.mxu0 0.0
        %2410 = vmatprep.subr.mxu0 0.0
        %2411 = vmatpush1.msra.mxu0 0.0
        %2412 = vmatprep.subr.mxu0 0.0
        %2413 = vmatpush1.msra.mxu0 0.0
        %2414 = vmatprep.subr.mxu0 0.0
        %2415 = vmatpush1.msra.mxu0 0.0
        %2416 = vmatprep.subr.mxu0 0.0
        %2417 = vmatpush1.msra.mxu0 0.0
        %2418 = vmatprep.subr.mxu0 0.0
        %2419 = vmatpush1.msra.mxu0 0.0
        %2420 = vmatprep.subr.mxu0 0.0
        %2421 = vmatpush1.msra.mxu0 0.0
        %2422 = vmatprep.mubr.f32.mxu0 0.0
        %2423 = vmatmul.mubr.f32.gmra.mrb[0].mxu0 %v2207
        %v2424 = vpop.f32.mrb[0].mxu0
        %v2425 = vadd.f32 %v2174, %v2424
        %v2426 = vpop.f32.mrb[0].mxu0
        %v2427 = vadd.f32 %v2174, %v2426
        %2428 = vmatprep.mubr.f32.mxu0 0.0
        %2429 = vmatmul.mubr.f32.gmra.mrb[0].mxu0 %v2210
        %v2430 = vpop.f32.mrb[0].mxu0
        %v2431 = vadd.f32 %v2179, %v2430
        %v2432 = vpop.f32.mrb[0].mxu0
        %v2433 = vadd.f32 %v2179, %v2432
        %2434 = vmatprep.mubr.f32.mxu0 0.0
        %2435 = vmatmul.mubr.f32.gmra.mrb[0].mxu0 %v2213
        %v2436 = vpop.f32.mrb[0].mxu0
        %v2437 = vadd.f32 %v2184, %v2436
        %v2438 = vpop.f32.mrb[0].mxu0
        %v2439 = vadd.f32 %v2184, %v2438
        %2440 = vmatprep.mubr.f32.mxu0 0.0
        %2441 = vmatmul.mubr.f32.gmra.mrb[0].mxu0 %v2216
        %v2442 = vpop.f32.mrb[0].mxu0
        %v2443 = vadd.f32 %v2189, %v2442
        %v2444 = vpop.f32.mrb[0].mxu0
        %v2445 = vadd.f32 %v2189, %v2444
        %2446 = vmatprep.mubr.f32.mxu0 0.0
        %2447 = vmatmul.mubr.f32.gmra.mrb[0].mxu0 %v2219
        %v2448 = vpop.f32.mrb[0].mxu0
        %v2449 = vadd.f32 %v2194, %v2448
        %v2450 = vpop.f32.mrb[0].mxu0
        %v2451 = vadd.f32 %v2194, %v2450
        %2452 = vmatprep.mubr.f32.mxu0 0.0
        %2453 = vmatmul.mubr.f32.gmra.mrb[0].mxu0 %v2222
        %v2454 = vpop.f32.mrb[0].mxu0
        %v2455 = vadd.f32 %v2199, %v2454
        %v2456 = vpop.f32.mrb[0].mxu0
        %v2457 = vadd.f32 %v2199, %v2456
        %2458 = vmatprep.mubr.f32.mxu0 0.0
        %2459 = vmatmul.mubr.f32.gmra.mrb[0].mxu0 %v2225
        %v2460 = vpop.f32.mrb[0].mxu0
        %v2461 = vadd.f32 %v2204, %v2460
        %v2462 = vpop.f32.mrb[0].mxu0
        %v2463 = vadd.f32 %v2204, %v2462
        %2464 = vdwg.mxu0
        %2465 = vmatprep.subr.mxu0 %v2106
        %2466 = vmatpush1.msra.mxu0 %v2105
        %2467 = vmatprep.subr.mxu0 %v2114
        %2468 = vmatpush1.msra.mxu0 %v2113
        %2469 = vmatprep.subr.mxu0 %v2122
        %2470 = vmatpush1.msra.mxu0 %v2121
        %2471 = vmatprep.subr.mxu0 %v2130
        %2472 = vmatpush1.msra.mxu0 %v2129
        %2473 = vmatprep.subr.mxu0 %v2138
        %2474 = vmatpush1.msra.mxu0 %v2137
        %2475 = vmatprep.subr.mxu0 %v2146
        %2476 = vmatpush1.msra.mxu0 %v2145
        %2477 = vmatprep.subr.mxu0 %v2243
        %2478 = vmatpush1.msra.mxu0 %v2240
        %2479 = vmatprep.subr.mxu0 0.0
        %2480 = vmatpush1.msra.mxu0 0.0
        %2481 = vmatprep.subr.mxu0 0.0
        %2482 = vmatpush1.msra.mxu0 0.0
        %2483 = vmatprep.subr.mxu0 0.0
        %2484 = vmatpush1.msra.mxu0 0.0
        %2485 = vmatprep.subr.mxu0 0.0
        %2486 = vmatpush1.msra.mxu0 0.0
        %2487 = vmatprep.subr.mxu0 0.0
        %2488 = vmatpush1.msra.mxu0 0.0
        %2489 = vmatprep.subr.mxu0 0.0
        %2490 = vmatpush1.msra.mxu0 0.0
        %2491 = vmatprep.subr.mxu0 0.0
        %2492 = vmatpush1.msra.mxu0 0.0
        %2493 = vmatprep.subr.mxu0 0.0
        %2494 = vmatpush1.msra.mxu0 0.0
        %2495 = vmatprep.subr.mxu0 0.0
        %2496 = vmatpush1.msra.mxu0 0.0
        %2497 = vmatprep.subr.mxu0 0.0
        %2498 = vmatpush1.msra.mxu0 0.0
        %2499 = vmatprep.subr.mxu0 0.0
        %2500 = vmatpush1.msra.mxu0 0.0
        %2501 = vmatprep.subr.mxu0 0.0
        %2502 = vmatpush1.msra.mxu0 0.0
        %2503 = vmatprep.subr.mxu0 0.0
        %2504 = vmatpush1.msra.mxu0 0.0
        %2505 = vmatprep.subr.mxu0 0.0
        %2506 = vmatpush1.msra.mxu0 0.0
        %2507 = vmatprep.subr.mxu0 0.0
        %2508 = vmatpush1.msra.mxu0 0.0
        %2509 = vmatprep.subr.mxu0 0.0
        %2510 = vmatpush1.msra.mxu0 0.0
        %2511 = vmatprep.subr.mxu0 0.0
        %2512 = vmatpush1.msra.mxu0 0.0
        %2513 = vmatprep.subr.mxu0 0.0
        %2514 = vmatpush1.msra.mxu0 0.0
        %2515 = vmatprep.subr.mxu0 0.0
        %2516 = vmatpush1.msra.mxu0 0.0
        %2517 = vmatprep.subr.mxu0 0.0
        %2518 = vmatpush1.msra.mxu0 0.0
        %2519 = vmatprep.subr.mxu0 0.0
        %2520 = vmatpush1.msra.mxu0 0.0
        %2521 = vmatprep.subr.mxu0 0.0
        %2522 = vmatpush1.msra.mxu0 0.0
        %2523 = vmatprep.subr.mxu0 0.0
        %2524 = vmatpush1.msra.mxu0 0.0
        %2525 = vmatprep.subr.mxu0 0.0
        %2526 = vmatpush1.msra.mxu0 0.0
        %2527 = vmatprep.subr.mxu0 0.0
        %2528 = vmatpush1.msra.mxu0 0.0
        %2529 = vmatprep.mubr.f32.mxu0 0.0
        %2530 = vmatmul.mubr.f32.gmra.mrb[0].mxu0 %v2207
        %v2531 = vpop.f32.mrb[0].mxu0
        %v2532 = vadd.f32 %v2174, %v2531
        %v2533 = vpop.f32.mrb[0].mxu0
        %v2534 = vadd.f32 %v2174, %v2533
        %2535 = vmatprep.mubr.f32.mxu0 0.0
        %2536 = vmatmul.mubr.f32.gmra.mrb[0].mxu0 %v2210
        %v2537 = vpop.f32.mrb[0].mxu0
        %v2538 = vadd.f32 %v2179, %v2537
        %v2539 = vpop.f32.mrb[0].mxu0
        %v2540 = vadd.f32 %v2179, %v2539
        %2541 = vmatprep.mubr.f32.mxu0 0.0
        %2542 = vmatmul.mubr.f32.gmra.mrb[0].mxu0 %v2213
        %v2543 = vpop.f32.mrb[0].mxu0
        %v2544 = vadd.f32 %v2184, %v2543
        %v2545 = vpop.f32.mrb[0].mxu0
        %v2546 = vadd.f32 %v2184, %v2545
        %2547 = vmatprep.mubr.f32.mxu0 0.0
        %2548 = vmatmul.mubr.f32.gmra.mrb[0].mxu0 %v2216
        %v2549 = vpop.f32.mrb[0].mxu0
        %v2550 = vadd.f32 %v2189, %v2549
        %v2551 = vpop.f32.mrb[0].mxu0
        %v2552 = vadd.f32 %v2189, %v2551
        %2553 = vmatprep.mubr.f32.mxu0 0.0
        %2554 = vmatmul.mubr.f32.gmra.mrb[0].mxu0 %v2219
        %v2555 = vpop.f32.mrb[0].mxu0
        %v2556 = vadd.f32 %v2194, %v2555
        %v2557 = vpop.f32.mrb[0].mxu0
        %v2558 = vadd.f32 %v2194, %v2557
        %2559 = vmatprep.mubr.f32.mxu0 0.0
        %2560 = vmatmul.mubr.f32.gmra.mrb[0].mxu0 %v2222
        %v2561 = vpop.f32.mrb[0].mxu0
        %v2562 = vadd.f32 %v2199, %v2561
        %v2563 = vpop.f32.mrb[0].mxu0
        %v2564 = vadd.f32 %v2199, %v2563
        %2565 = vmatprep.mubr.f32.mxu0 0.0
        %2566 = vmatmul.mubr.f32.gmra.mrb[0].mxu0 %v2225
        %v2567 = vpop.f32.mrb[0].mxu0
        %v2568 = vadd.f32 %v2204, %v2567
        %v2569 = vpop.f32.mrb[0].mxu0
        %v2570 = vadd.f32 %v2204, %v2569
        %2571 = vdwg.mxu0
        %2572 = vmatprep.subr.mxu0 %v2108
        %2573 = vmatpush1.msra.mxu0 %v2107
        %2574 = vmatprep.subr.mxu0 %v2116
        %2575 = vmatpush1.msra.mxu0 %v2115
        %2576 = vmatprep.subr.mxu0 %v2124
        %2577 = vmatpush1.msra.mxu0 %v2123
        %2578 = vmatprep.subr.mxu0 %v2132
        %2579 = vmatpush1.msra.mxu0 %v2131
        %2580 = vmatprep.subr.mxu0 %v2140
        %2581 = vmatpush1.msra.mxu0 %v2139
        %2582 = vmatprep.subr.mxu0 %v2148
        %2583 = vmatpush1.msra.mxu0 %v2147
        %2584 = vmatprep.subr.mxu0 %v2249
        %2585 = vmatpush1.msra.mxu0 %v2246
        %2586 = vmatprep.subr.mxu0 0.0
        %2587 = vmatpush1.msra.mxu0 0.0
        %2588 = vmatprep.subr.mxu0 0.0
        %2589 = vmatpush1.msra.mxu0 0.0
        %2590 = vmatprep.subr.mxu0 0.0
        %2591 = vmatpush1.msra.mxu0 0.0
        %2592 = vmatprep.subr.mxu0 0.0
        %2593 = vmatpush1.msra.mxu0 0.0
        %2594 = vmatprep.subr.mxu0 0.0
        %2595 = vmatpush1.msra.mxu0 0.0
        %2596 = vmatprep.subr.mxu0 0.0
        %2597 = vmatpush1.msra.mxu0 0.0
        %2598 = vmatprep.subr.mxu0 0.0
        %2599 = vmatpush1.msra.mxu0 0.0
        %2600 = vmatprep.subr.mxu0 0.0
        %2601 = vmatpush1.msra.mxu0 0.0
        %2602 = vmatprep.subr.mxu0 0.0
        %2603 = vmatpush1.msra.mxu0 0.0
        %2604 = vmatprep.subr.mxu0 0.0
        %2605 = vmatpush1.msra.mxu0 0.0
        %2606 = vmatprep.subr.mxu0 0.0
        %2607 = vmatpush1.msra.mxu0 0.0
        %2608 = vmatprep.subr.mxu0 0.0
        %2609 = vmatpush1.msra.mxu0 0.0
        %2610 = vmatprep.subr.mxu0 0.0
        %2611 = vmatpush1.msra.mxu0 0.0
        %2612 = vmatprep.subr.mxu0 0.0
        %2613 = vmatpush1.msra.mxu0 0.0
        %2614 = vmatprep.subr.mxu0 0.0
        %2615 = vmatpush1.msra.mxu0 0.0
        %2616 = vmatprep.subr.mxu0 0.0
        %2617 = vmatpush1.msra.mxu0 0.0
        %2618 = vmatprep.subr.mxu0 0.0
        %2619 = vmatpush1.msra.mxu0 0.0
        %2620 = vmatprep.subr.mxu0 0.0
        %2621 = vmatpush1.msra.mxu0 0.0
        %2622 = vmatprep.subr.mxu0 0.0
        %2623 = vmatpush1.msra.mxu0 0.0
        %2624 = vmatprep.subr.mxu0 0.0
        %2625 = vmatpush1.msra.mxu0 0.0
        %2626 = vmatprep.subr.mxu0 0.0
        %2627 = vmatpush1.msra.mxu0 0.0
        %2628 = vmatprep.subr.mxu0 0.0
        %2629 = vmatpush1.msra.mxu0 0.0
        %2630 = vmatprep.subr.mxu0 0.0
        %2631 = vmatpush1.msra.mxu0 0.0
        %2632 = vmatprep.subr.mxu0 0.0
        %2633 = vmatpush1.msra.mxu0 0.0
        %2634 = vmatprep.subr.mxu0 0.0
        %2635 = vmatpush1.msra.mxu0 0.0
        %2636 = vmatprep.mubr.f32.mxu0 0.0
        %2637 = vmatmul.mubr.f32.gmra.mrb[0].mxu0 %v2207
        %v2638 = vpop.f32.mrb[0].mxu0
        %v2639 = vadd.f32 %v2174, %v2638
        %v2640 = vpop.f32.mrb[0].mxu0
        %v2641 = vadd.f32 %v2174, %v2640
        %2642 = vmatprep.mubr.f32.mxu0 0.0
        %2643 = vmatmul.mubr.f32.gmra.mrb[0].mxu0 %v2210
        %v2644 = vpop.f32.mrb[0].mxu0
        %v2645 = vadd.f32 %v2179, %v2644
        %v2646 = vpop.f32.mrb[0].mxu0
        %v2647 = vadd.f32 %v2179, %v2646
        %2648 = vmatprep.mubr.f32.mxu0 0.0
        %2649 = vmatmul.mubr.f32.gmra.mrb[0].mxu0 %v2213
        %v2650 = vpop.f32.mrb[0].mxu0
        %v2651 = vadd.f32 %v2184, %v2650
        %v2652 = vpop.f32.mrb[0].mxu0
        %v2653 = vadd.f32 %v2184, %v2652
        %2654 = vmatprep.mubr.f32.mxu0 0.0
        %2655 = vmatmul.mubr.f32.gmra.mrb[0].mxu0 %v2216
        %v2656 = vpop.f32.mrb[0].mxu0
        %v2657 = vadd.f32 %v2189, %v2656
        %v2658 = vpop.f32.mrb[0].mxu0
        %v2659 = vadd.f32 %v2189, %v2658
        %2660 = vmatprep.mubr.f32.mxu0 0.0
        %2661 = vmatmul.mubr.f32.gmra.mrb[0].mxu0 %v2219
        %v2662 = vpop.f32.mrb[0].mxu0
        %v2663 = vadd.f32 %v2194, %v2662
        %v2664 = vpop.f32.mrb[0].mxu0
        %v2665 = vadd.f32 %v2194, %v2664
        %2666 = vmatprep.mubr.f32.mxu0 0.0
        %2667 = vmatmul.mubr.f32.gmra.mrb[0].mxu0 %v2222
        %v2668 = vpop.f32.mrb[0].mxu0
        %v2669 = vadd.f32 %v2199, %v2668
        %v2670 = vpop.f32.mrb[0].mxu0
        %v2671 = vadd.f32 %v2199, %v2670
        %2672 = vmatprep.mubr.f32.mxu0 0.0
        %2673 = vmatmul.mubr.f32.gmra.mrb[0].mxu0 %v2225
        %v2674 = vpop.f32.mrb[0].mxu0
        %v2675 = vadd.f32 %v2204, %v2674
        %v2676 = vpop.f32.mrb[0].mxu0
        %v2677 = vadd.f32 %v2204, %v2676
        %2678 = vdwg.mxu0
        %v2679 = vtanh.pop %v2318
        %v2680 = vtanh.pop %v2320
        %v2681 = vtanh.pop %v2425
        %v2682 = vtanh.pop %v2427
        %v2683 = vtanh.pop %v2532
        %v2684 = vtanh.pop %v2534
        %v2685 = vtanh.pop %v2639
        %v2686 = vtanh.pop %v2641
        %v2687 = vtanh.pop %v2324
        %v2688 = vtanh.pop %v2326
        %v2689 = vtanh.pop %v2431
        %v2690 = vtanh.pop %v2433
        %v2691 = vtanh.pop %v2538
        %v2692 = vtanh.pop %v2540
        %v2693 = vtanh.pop %v2645
        %v2694 = vtanh.pop %v2647
        %v2695 = vtanh.pop %v2330
        %v2696 = vtanh.pop %v2332
        %v2697 = vtanh.pop %v2437
        %v2698 = vtanh.pop %v2439
        %v2699 = vtanh.pop %v2544
        %v2700 = vtanh.pop %v2546
        %v2701 = vtanh.pop %v2651
        %v2702 = vtanh.pop %v2653
        %v2703 = vtanh.pop %v2336
        %v2704 = vtanh.pop %v2338
        %v2705 = vtanh.pop %v2443
        %v2706 = vtanh.pop %v2445
        %v2707 = vtanh.pop %v2550
        %v2708 = vtanh.pop %v2552
        %v2709 = vtanh.pop %v2657
        %v2710 = vtanh.pop %v2659
        %v2711 = vtanh.pop %v2342
        %v2712 = vtanh.pop %v2344
        %v2713 = vtanh.pop %v2449
        %v2714 = vtanh.pop %v2451
        %v2715 = vtanh.pop %v2556
        %v2716 = vtanh.pop %v2558
        %v2717 = vtanh.pop %v2663
        %v2718 = vtanh.pop %v2665
        %v2719 = vtanh.pop %v2348
        %v2720 = vtanh.pop %v2350
        %v2721 = vtanh.pop %v2455
        %v2722 = vtanh.pop %v2457
        %v2723 = vtanh.pop %v2562
        %v2724 = vtanh.pop %v2564
        %v2725 = vtanh.pop %v2669
        %v2726 = vtanh.pop %v2671
        %v2727 = vtanh.pop %v2354
        %v2728 = vtanh.pop %v2356
        %v2729 = vtanh.pop %v2461
        %v2730 = vtanh.pop %v2463
        %v2731 = vtanh.pop %v2568
        %v2732 = vtanh.pop %v2570
        %v2733 = vtanh.pop %v2675
        %v2734 = vtanh.pop %v2677
        %v2735 = vld [vmem:[%s9] sm:$0x1]
        %v2736 = vld [vmem:[#allocation2] sm:$0x1]
        %2738 = vset.pattern.permute.xlu0 0
        %2739 = vperm.xlu0 %2738, %v2736
        %v2740 = vpop.permute.xlu0 %2739
        %v2742 = vlaneseq
        %v2743 = vshrl.u32 %v2742, 7
        %v2744 = vsub.s32 0, %v2743
        %v2745 = vrot.slane %v2740, %v2744
        %v2747 = vsel %vm1049, %v2735, 0
        %v2750 = vsel %vm499, %v2727, 0
        %v2753 = vsel %vm499, %v2728, 0
        %v2756 = vsel %vm499, %v2729, 0
        %v2759 = vsel %vm499, %v2730, 0
        %v2762 = vsel %vm499, %v2731, 0
        %v2765 = vsel %vm499, %v2732, 0
        %v2768 = vsel %vm499, %v2733, 0
        %v2771 = vsel %vm499, %v2734, 0
        %2773 = vmatprep.subr.mxu0 %v2680
        %2774 = vmatpush1.msra.mxu0 %v2679
        %2775 = vmatprep.subr.mxu0 %v2688
        %2776 = vmatpush1.msra.mxu0 %v2687
        %2777 = vmatprep.subr.mxu0 %v2696
        %2778 = vmatpush1.msra.mxu0 %v2695
        %2779 = vmatprep.subr.mxu0 %v2704
        %2780 = vmatpush1.msra.mxu0 %v2703
        %2781 = vmatprep.subr.mxu0 %v2712
        %2782 = vmatpush1.msra.mxu0 %v2711
        %2783 = vmatprep.subr.mxu0 %v2720
        %2784 = vmatpush1.msra.mxu0 %v2719
        %2785 = vmatprep.subr.mxu0 %v2753
        %2786 = vmatpush1.msra.mxu0 %v2750
        %2787 = vmatprep.subr.mxu0 0.0
        %2788 = vmatpush1.msra.mxu0 0.0
        %2789 = vmatprep.subr.mxu0 0.0
        %2790 = vmatpush1.msra.mxu0 0.0
        %2791 = vmatprep.subr.mxu0 0.0
        %2792 = vmatpush1.msra.mxu0 0.0
        %2793 = vmatprep.subr.mxu0 0.0
        %2794 = vmatpush1.msra.mxu0 0.0
        %2795 = vmatprep.subr.mxu0 0.0
        %2796 = vmatpush1.msra.mxu0 0.0
        %2797 = vmatprep.subr.mxu0 0.0
        %2798 = vmatpush1.msra.mxu0 0.0
        %2799 = vmatprep.subr.mxu0 0.0
        %2800 = vmatpush1.msra.mxu0 0.0
        %2801 = vmatprep.subr.mxu0 0.0
        %2802 = vmatpush1.msra.mxu0 0.0
        %2803 = vmatprep.subr.mxu0 0.0
        %2804 = vmatpush1.msra.mxu0 0.0
        %2805 = vmatprep.subr.mxu0 0.0
        %2806 = vmatpush1.msra.mxu0 0.0
        %2807 = vmatprep.subr.mxu0 0.0
        %2808 = vmatpush1.msra.mxu0 0.0
        %2809 = vmatprep.subr.mxu0 0.0
        %2810 = vmatpush1.msra.mxu0 0.0
        %2811 = vmatprep.subr.mxu0 0.0
        %2812 = vmatpush1.msra.mxu0 0.0
        %2813 = vmatprep.subr.mxu0 0.0
        %2814 = vmatpush1.msra.mxu0 0.0
        %2815 = vmatprep.subr.mxu0 0.0
        %2816 = vmatpush1.msra.mxu0 0.0
        %2817 = vmatprep.subr.mxu0 0.0
        %2818 = vmatpush1.msra.mxu0 0.0
        %2819 = vmatprep.subr.mxu0 0.0
        %2820 = vmatpush1.msra.mxu0 0.0
        %2821 = vmatprep.subr.mxu0 0.0
        %2822 = vmatpush1.msra.mxu0 0.0
        %2823 = vmatprep.subr.mxu0 0.0
        %2824 = vmatpush1.msra.mxu0 0.0
        %2825 = vmatprep.subr.mxu0 0.0
        %2826 = vmatpush1.msra.mxu0 0.0
        %2827 = vmatprep.subr.mxu0 0.0
        %2828 = vmatpush1.msra.mxu0 0.0
        %2829 = vmatprep.subr.mxu0 0.0
        %2830 = vmatpush1.msra.mxu0 0.0
        %2831 = vmatprep.subr.mxu0 0.0
        %2832 = vmatpush1.msra.mxu0 0.0
        %2833 = vmatprep.subr.mxu0 0.0
        %2834 = vmatpush1.msra.mxu0 0.0
        %2835 = vmatprep.subr.mxu0 0.0
        %2836 = vmatpush1.msra.mxu0 0.0
        %2837 = vmatprep.mubr.f32.mxu0 0.0
        %2838 = vmatmul.mubr.f32.gmra.mrb[0].mxu0 %v2747
        %v2839 = vpop.f32.mrb[0].mxu0
        %v2840 = vadd.f32 %v2745, %v2839
        %v2841 = vpop.f32.mrb[0].mxu0
        %v2842 = vadd.f32 %v2745, %v2841
        %2843 = vdwg.mxu0
        %2844 = vmatprep.subr.mxu0 %v2682
        %2845 = vmatpush1.msra.mxu0 %v2681
        %2846 = vmatprep.subr.mxu0 %v2690
        %2847 = vmatpush1.msra.mxu0 %v2689
        %2848 = vmatprep.subr.mxu0 %v2698
        %2849 = vmatpush1.msra.mxu0 %v2697
        %2850 = vmatprep.subr.mxu0 %v2706
        %2851 = vmatpush1.msra.mxu0 %v2705
        %2852 = vmatprep.subr.mxu0 %v2714
        %2853 = vmatpush1.msra.mxu0 %v2713
        %2854 = vmatprep.subr.mxu0 %v2722
        %2855 = vmatpush1.msra.mxu0 %v2721
        %2856 = vmatprep.subr.mxu0 %v2759
        %2857 = vmatpush1.msra.mxu0 %v2756
        %2858 = vmatprep.subr.mxu0 0.0
        %2859 = vmatpush1.msra.mxu0 0.0
        %2860 = vmatprep.subr.mxu0 0.0
        %2861 = vmatpush1.msra.mxu0 0.0
        %2862 = vmatprep.subr.mxu0 0.0
        %2863 = vmatpush1.msra.mxu0 0.0
        %2864 = vmatprep.subr.mxu0 0.0
        %2865 = vmatpush1.msra.mxu0 0.0
        %2866 = vmatprep.subr.mxu0 0.0
        %2867 = vmatpush1.msra.mxu0 0.0
        %2868 = vmatprep.subr.mxu0 0.0
        %2869 = vmatpush1.msra.mxu0 0.0
        %2870 = vmatprep.subr.mxu0 0.0
        %2871 = vmatpush1.msra.mxu0 0.0
        %2872 = vmatprep.subr.mxu0 0.0
        %2873 = vmatpush1.msra.mxu0 0.0
        %2874 = vmatprep.subr.mxu0 0.0
        %2875 = vmatpush1.msra.mxu0 0.0
        %2876 = vmatprep.subr.mxu0 0.0
        %2877 = vmatpush1.msra.mxu0 0.0
        %2878 = vmatprep.subr.mxu0 0.0
        %2879 = vmatpush1.msra.mxu0 0.0
        %2880 = vmatprep.subr.mxu0 0.0
        %2881 = vmatpush1.msra.mxu0 0.0
        %2882 = vmatprep.subr.mxu0 0.0
        %2883 = vmatpush1.msra.mxu0 0.0
        %2884 = vmatprep.subr.mxu0 0.0
        %2885 = vmatpush1.msra.mxu0 0.0
        %2886 = vmatprep.subr.mxu0 0.0
        %2887 = vmatpush1.msra.mxu0 0.0
        %2888 = vmatprep.subr.mxu0 0.0
        %2889 = vmatpush1.msra.mxu0 0.0
        %2890 = vmatprep.subr.mxu0 0.0
        %2891 = vmatpush1.msra.mxu0 0.0
        %2892 = vmatprep.subr.mxu0 0.0
        %2893 = vmatpush1.msra.mxu0 0.0
        %2894 = vmatprep.subr.mxu0 0.0
        %2895 = vmatpush1.msra.mxu0 0.0
        %2896 = vmatprep.subr.mxu0 0.0
        %2897 = vmatpush1.msra.mxu0 0.0
        %2898 = vmatprep.subr.mxu0 0.0
        %2899 = vmatpush1.msra.mxu0 0.0
        %2900 = vmatprep.subr.mxu0 0.0
        %2901 = vmatpush1.msra.mxu0 0.0
        %2902 = vmatprep.subr.mxu0 0.0
        %2903 = vmatpush1.msra.mxu0 0.0
        %2904 = vmatprep.subr.mxu0 0.0
        %2905 = vmatpush1.msra.mxu0 0.0
        %2906 = vmatprep.subr.mxu0 0.0
        %2907 = vmatpush1.msra.mxu0 0.0
        %2908 = vmatprep.mubr.f32.mxu0 0.0
        %2909 = vmatmul.mubr.f32.gmra.mrb[0].mxu0 %v2747
        %v2910 = vpop.f32.mrb[0].mxu0
        %v2911 = vadd.f32 %v2745, %v2910
        %v2912 = vpop.f32.mrb[0].mxu0
        %v2913 = vadd.f32 %v2745, %v2912
        %2914 = vdwg.mxu0
        %2915 = vmatprep.subr.mxu0 %v2684
        %2916 = vmatpush1.msra.mxu0 %v2683
        %2917 = vmatprep.subr.mxu0 %v2692
        %2918 = vmatpush1.msra.mxu0 %v2691
        %2919 = vmatprep.subr.mxu0 %v2700
        %2920 = vmatpush1.msra.mxu0 %v2699
        %2921 = vmatprep.subr.mxu0 %v2708
        %2922 = vmatpush1.msra.mxu0 %v2707
        %2923 = vmatprep.subr.mxu0 %v2716
        %2924 = vmatpush1.msra.mxu0 %v2715
        %2925 = vmatprep.subr.mxu0 %v2724
        %2926 = vmatpush1.msra.mxu0 %v2723
        %2927 = vmatprep.subr.mxu0 %v2765
        %2928 = vmatpush1.msra.mxu0 %v2762
        %2929 = vmatprep.subr.mxu0 0.0
        %2930 = vmatpush1.msra.mxu0 0.0
        %2931 = vmatprep.subr.mxu0 0.0
        %2932 = vmatpush1.msra.mxu0 0.0
        %2933 = vmatprep.subr.mxu0 0.0
        %2934 = vmatpush1.msra.mxu0 0.0
        %2935 = vmatprep.subr.mxu0 0.0
        %2936 = vmatpush1.msra.mxu0 0.0
        %2937 = vmatprep.subr.mxu0 0.0
        %2938 = vmatpush1.msra.mxu0 0.0
        %2939 = vmatprep.subr.mxu0 0.0
        %2940 = vmatpush1.msra.mxu0 0.0
        %2941 = vmatprep.subr.mxu0 0.0
        %2942 = vmatpush1.msra.mxu0 0.0
        %2943 = vmatprep.subr.mxu0 0.0
        %2944 = vmatpush1.msra.mxu0 0.0
        %2945 = vmatprep.subr.mxu0 0.0
        %2946 = vmatpush1.msra.mxu0 0.0
        %2947 = vmatprep.subr.mxu0 0.0
        %2948 = vmatpush1.msra.mxu0 0.0
        %2949 = vmatprep.subr.mxu0 0.0
        %2950 = vmatpush1.msra.mxu0 0.0
        %2951 = vmatprep.subr.mxu0 0.0
        %2952 = vmatpush1.msra.mxu0 0.0
        %2953 = vmatprep.subr.mxu0 0.0
        %2954 = vmatpush1.msra.mxu0 0.0
        %2955 = vmatprep.subr.mxu0 0.0
        %2956 = vmatpush1.msra.mxu0 0.0
        %2957 = vmatprep.subr.mxu0 0.0
        %2958 = vmatpush1.msra.mxu0 0.0
        %2959 = vmatprep.subr.mxu0 0.0
        %2960 = vmatpush1.msra.mxu0 0.0
        %2961 = vmatprep.subr.mxu0 0.0
        %2962 = vmatpush1.msra.mxu0 0.0
        %2963 = vmatprep.subr.mxu0 0.0
        %2964 = vmatpush1.msra.mxu0 0.0
        %2965 = vmatprep.subr.mxu0 0.0
        %2966 = vmatpush1.msra.mxu0 0.0
        %2967 = vmatprep.subr.mxu0 0.0
        %2968 = vmatpush1.msra.mxu0 0.0
        %2969 = vmatprep.subr.mxu0 0.0
        %2970 = vmatpush1.msra.mxu0 0.0
        %2971 = vmatprep.subr.mxu0 0.0
        %2972 = vmatpush1.msra.mxu0 0.0
        %2973 = vmatprep.subr.mxu0 0.0
        %2974 = vmatpush1.msra.mxu0 0.0
        %2975 = vmatprep.subr.mxu0 0.0
        %2976 = vmatpush1.msra.mxu0 0.0
        %2977 = vmatprep.subr.mxu0 0.0
        %2978 = vmatpush1.msra.mxu0 0.0
        %2979 = vmatprep.mubr.f32.mxu0 0.0
        %2980 = vmatmul.mubr.f32.gmra.mrb[0].mxu0 %v2747
        %v2981 = vpop.f32.mrb[0].mxu0
        %v2982 = vadd.f32 %v2745, %v2981
        %v2983 = vpop.f32.mrb[0].mxu0
        %v2984 = vadd.f32 %v2745, %v2983
        %2985 = vdwg.mxu0
        %2986 = vmatprep.subr.mxu0 %v2686
        %2987 = vmatpush1.msra.mxu0 %v2685
        %2988 = vmatprep.subr.mxu0 %v2694
        %2989 = vmatpush1.msra.mxu0 %v2693
        %2990 = vmatprep.subr.mxu0 %v2702
        %2991 = vmatpush1.msra.mxu0 %v2701
        %2992 = vmatprep.subr.mxu0 %v2710
        %2993 = vmatpush1.msra.mxu0 %v2709
        %2994 = vmatprep.subr.mxu0 %v2718
        %2995 = vmatpush1.msra.mxu0 %v2717
        %2996 = vmatprep.subr.mxu0 %v2726
        %2997 = vmatpush1.msra.mxu0 %v2725
        %2998 = vmatprep.subr.mxu0 %v2771
        %2999 = vmatpush1.msra.mxu0 %v2768
        %3000 = vmatprep.subr.mxu0 0.0
        %3001 = vmatpush1.msra.mxu0 0.0
        %3002 = vmatprep.subr.mxu0 0.0
        %3003 = vmatpush1.msra.mxu0 0.0
        %3004 = vmatprep.subr.mxu0 0.0
        %3005 = vmatpush1.msra.mxu0 0.0
        %3006 = vmatprep.subr.mxu0 0.0
        %3007 = vmatpush1.msra.mxu0 0.0
        %3008 = vmatprep.subr.mxu0 0.0
        %3009 = vmatpush1.msra.mxu0 0.0
        %3010 = vmatprep.subr.mxu0 0.0
        %3011 = vmatpush1.msra.mxu0 0.0
        %3012 = vmatprep.subr.mxu0 0.0
        %3013 = vmatpush1.msra.mxu0 0.0
        %3014 = vmatprep.subr.mxu0 0.0
        %3015 = vmatpush1.msra.mxu0 0.0
        %3016 = vmatprep.subr.mxu0 0.0
        %3017 = vmatpush1.msra.mxu0 0.0
        %3018 = vmatprep.subr.mxu0 0.0
        %3019 = vmatpush1.msra.mxu0 0.0
        %3020 = vmatprep.subr.mxu0 0.0
        %3021 = vmatpush1.msra.mxu0 0.0
        %3022 = vmatprep.subr.mxu0 0.0
        %3023 = vmatpush1.msra.mxu0 0.0
        %3024 = vmatprep.subr.mxu0 0.0
        %3025 = vmatpush1.msra.mxu0 0.0
        %3026 = vmatprep.subr.mxu0 0.0
        %3027 = vmatpush1.msra.mxu0 0.0
        %3028 = vmatprep.subr.mxu0 0.0
        %3029 = vmatpush1.msra.mxu0 0.0
        %3030 = vmatprep.subr.mxu0 0.0
        %3031 = vmatpush1.msra.mxu0 0.0
        %3032 = vmatprep.subr.mxu0 0.0
        %3033 = vmatpush1.msra.mxu0 0.0
        %3034 = vmatprep.subr.mxu0 0.0
        %3035 = vmatpush1.msra.mxu0 0.0
        %3036 = vmatprep.subr.mxu0 0.0
        %3037 = vmatpush1.msra.mxu0 0.0
        %3038 = vmatprep.subr.mxu0 0.0
        %3039 = vmatpush1.msra.mxu0 0.0
        %3040 = vmatprep.subr.mxu0 0.0
        %3041 = vmatpush1.msra.mxu0 0.0
        %3042 = vmatprep.subr.mxu0 0.0
        %3043 = vmatpush1.msra.mxu0 0.0
        %3044 = vmatprep.subr.mxu0 0.0
        %3045 = vmatpush1.msra.mxu0 0.0
        %3046 = vmatprep.subr.mxu0 0.0
        %3047 = vmatpush1.msra.mxu0 0.0
        %3048 = vmatprep.subr.mxu0 0.0
        %3049 = vmatpush1.msra.mxu0 0.0
        %3050 = vmatprep.mubr.f32.mxu0 0.0
        %3051 = vmatmul.mubr.f32.gmra.mrb[0].mxu0 %v2747
        %v3052 = vpop.f32.mrb[0].mxu0
        %v3053 = vadd.f32 %v2745, %v3052
        %v3054 = vpop.f32.mrb[0].mxu0
        %v3055 = vadd.f32 %v2745, %v3054
        %3056 = vdwg.mxu0
        %v3065 = vcombine.low %v2840, %v2842
        %v3066 = vcombine.low %v2911, %v2913
        %v3067 = vcombine.low %v2982, %v2984
        %v3068 = vcombine.low %v3053, %v3055
        %v3070 = vunpack.c.l.s4 1966171168
        %v3071 = vunpack.c.0.s8 %v3070
        %v3072 = vlaneseq
        %v3073 = vshrl.u32 %v3072, 7
        %v3074 = vsub.s32 %v3071, %v3073
        %v3075 = vrot.slane %v3065, %v3074
        %v3077 = vunpack.c.l.s4 1966171168
        %v3078 = vunpack.c.0.s8 %v3077
        %v3079 = vlaneseq
        %v3080 = vshrl.u32 %v3079, 7
        %v3081 = vsub.s32 %v3078, %v3080
        %v3082 = vrot.slane %v3066, %v3081
        %v3084 = vunpack.c.l.s4 1966171168
        %v3085 = vunpack.c.0.s8 %v3084
        %v3086 = vlaneseq
        %v3087 = vshrl.u32 %v3086, 7
        %v3088 = vsub.s32 %v3085, %v3087
        %v3089 = vrot.slane %v3067, %v3088
        %v3091 = vunpack.c.l.s4 1966171168
        %v3092 = vunpack.c.0.s8 %v3091
        %v3093 = vlaneseq
        %v3094 = vshrl.u32 %v3093, 7
        %v3095 = vsub.s32 %v3092, %v3094
        %v3096 = vrot.slane %v3068, %v3095
        %v3097 = vcombine.low %v3075, %v3082
        %v3098 = vcombine.low %v3089, %v3096
        %v3100 = vunpack.c.l.s4 1966171168
        %v3101 = vunpack.c.0.s8 %v3100
        %v3102 = vlaneseq
        %v3103 = vshrl.u32 %v3102, 7
        %v3104 = vsub.s32 %v3101, %v3103
        %v3105 = vrot.slane %v3097, %v3104
        %v3107 = vunpack.c.l.s4 1966171168
        %v3108 = vunpack.c.0.s8 %v3107
        %v3109 = vlaneseq
        %v3110 = vshrl.u32 %v3109, 7
        %v3111 = vsub.s32 %v3108, %v3110
        %v3112 = vrot.slane %v3098, %v3111
        %v3113 = vcombine.low %v3105, %v3112
        %3115 = vst [vmem:[%s382] sm:$0xff] %v3113
        %s3116 = sand.u32 %s271, 1
        %s3117 = scalar_lea.sflag [#allocation4], %s3116
        %s3118 = sand.u32 %s271, 1
        %s3119 = smul.addr %s3118, 8
        %s3120 = scalar_lea.vmem [#allocation3], %s3119
        // Predicated region
        $region65: #{tpu_custom_call.1} parent=63 // pred_check
          %p3121 = pneg %p281
        $region66: #{tpu_custom_call.1} parent=63 // pred_check_branch
          %3123 = sbr.rel (%p3121) target = $region68
        $region67: #{tpu_custom_call.1} parent=63 // pred_region
          %s3124 = smul.u32 8, %s27
          %s3126 = ssub.s32 128, 128
          %3127 = vsyncadd %s3117, %s3126
          %s3128 = smul.addr %s3124, 16
          %s3129 = scalar_lea.hbm %s11, %s3128
          %s3131 = sshll.u32 %s3120, 4
          %s3132 = int_to_ptr.vmem [resolvable:$true] %s3131
          %3134 = dma.vmem_to_hbm [thread:$0]  %s3132, 128, %s3129, %s3117
        $region68: #{tpu_custom_call.1} parent=63 // pred_fallthru
          _
      $region64: #{tpu_custom_call.1} parent=5 // pred_fallthru
        _
      %p3135 = scmp.le.s32.totalorder 2, %s22
      // Predicated region
      $region69: #{tpu_custom_call.1} parent=5 // pred_check
        %p3136 = pneg %p3135
      $region70: #{tpu_custom_call.1} parent=5 // pred_check_branch
        %3138 = sbr.rel (%p3136) target = $region72
      $region71: #{tpu_custom_call.1} parent=5 // pred_region
        %s3139 = ssub.s32 %s22, 2
        // Predicated region
        $region73: #{tpu_custom_call.1} parent=71 // pred_check
          %p3140 = pneg %p287
        $region74: #{tpu_custom_call.1} parent=71 // pred_check_branch
          %3142 = sbr.rel (%p3140) target = $region76
        $region75: #{tpu_custom_call.1} parent=71 // pred_region
          %s3143 = sand.u32 %s272, 1
          %s3144 = scalar_lea.sflag [#allocation4], %s3143
          %s3145 = sand.u32 %s272, 1
          %s3146 = smul.addr %s3145, 8
          %s3147 = scalar_lea.vmem [#allocation3], %s3146
          %3148 = dma.done %s3144, 128
        $region76: #{tpu_custom_call.1} parent=71 // pred_fallthru
          _
      $region72: #{tpu_custom_call.1} parent=5 // pred_fallthru
        _
    $region6: #{tpu_custom_call.1} parent=1 // loop_footer
      %s26 = sadd.s32 1, %s22
    $region7: #{tpu_custom_call.1} parent=1 // loop_footer_branch
      %21 = sbr.rel target = $region3
    $region8: #{tpu_custom_call.1} parent=1 // loop_exit
      _
    %3149 = vsyncpa [#allocation4], 1
    %s3150 = scalar_lea.sflag [#allocation4], 1
    %3151 = vsyncpa %s3150, 1

</llo_original>
